<compile_context>
chip_gen: v7x
topology: tpu7x:2x2x1
jax: 0.10.0
libtpu: 0.0.40
codegen_flags: <defaults>
</compile_context>

<pallas_src>
import functools
import math

import jax
import jax.numpy as jnp
from jax.experimental import pallas as pl
from jax.experimental.pallas import tpu as pltpu

LN_EPS = 1e-5  # PyTorch nn.LayerNorm default


def _pick_row_tile(m, max_rows=256):
    """Largest row tile <= max_rows that divides m (multiple of 8 when tiled)."""
    if m <= max_rows:
        return m
    for t in range(max_rows, 7, -1):
        if m % t == 0 and t % 8 == 0:
            return t
    return m  # fallback: single block


# ---------------------------------------------------------------------------
# Kernel 1: fused dif + Q/K/V projections (Q for both inputs, K/V of dif once)
# ---------------------------------------------------------------------------
def _qkv_kernel(x_ref, wq_ref, wk_ref, wv_ref, b_ref, q_ref, k_ref, v_ref):
    x1 = x_ref[0].astype(jnp.float32)          # (tM, D)
    x2 = x_ref[1].astype(jnp.float32)
    dif = x2 - x1                              # fused: never materialized in HBM
    wq = wq_ref[...].astype(jnp.float32)
    wk = wk_ref[...].astype(jnp.float32)
    wv = wv_ref[...].astype(jnp.float32)
    bq = b_ref[0:1, :].astype(jnp.float32)
    bk = b_ref[1:2, :].astype(jnp.float32)
    bv = b_ref[2:3, :].astype(jnp.float32)
    q_ref[0] = (jnp.dot(x1, wq, preferred_element_type=jnp.float32) + bq).astype(q_ref.dtype)
    q_ref[1] = (jnp.dot(x2, wq, preferred_element_type=jnp.float32) + bq).astype(q_ref.dtype)
    k_ref[...] = (jnp.dot(dif, wk, preferred_element_type=jnp.float32) + bk).astype(k_ref.dtype)
    v_ref[...] = (jnp.dot(dif, wv, preferred_element_type=jnp.float32) + bv).astype(v_ref.dtype)


# ---------------------------------------------------------------------------
# Kernel 2: softmax attention per (batch*head). Grid = (BH, 2); the inner axis
# selects {queries-of-input1, queries-of-input2}, so the K/V block index is
# constant across it and Pallas keeps K/V resident (no redundant DMA).
# ---------------------------------------------------------------------------
def _attn_kernel(q_ref, k_ref, v_ref, o_ref, *, scale):
    q = q_ref[0, 0].astype(jnp.float32)        # (S, Dh)
    k = k_ref[0].astype(jnp.float32)           # (S, Dh)
    v = v_ref[0]                               # (S, Dh)
    s = jax.lax.dot_general(q, k, (((1,), (1,)), ((), ())),
                            preferred_element_type=jnp.float32) * scale   # (S, S)
    s = s - jnp.max(s, axis=-1, keepdims=True)
    p = jnp.exp(s)
    p = p / jnp.sum(p, axis=-1, keepdims=True)
    # TODO(synk): training-mode attention-weight dropout omitted; eval-mode identity.
    o = jnp.dot(p.astype(v.dtype), v, preferred_element_type=jnp.float32)
    o_ref[0, 0] = o.astype(o_ref.dtype)


# ---------------------------------------------------------------------------
# Kernel 3: attention out-projection + residual + LayerNorm1 (fused epilogue)
# ---------------------------------------------------------------------------
def _outproj_ln_kernel(a_ref, r_ref, wo_ref, bo_ref, g_ref, be_ref, o_ref, *, eps):
    a = a_ref[0].astype(jnp.float32)           # (tM, D)
    r = r_ref[0].astype(jnp.float32)
    y = jnp.dot(a, wo_ref[...].astype(jnp.float32),
                preferred_element_type=jnp.float32) + bo_ref[0:1, :].astype(jnp.float32)
    # TODO(synk): dropout1 (training mode) omitted; eval-mode identity.
    y = r + y
    mu = jnp.mean(y, axis=-1, keepdims=True)
    d = y - mu
    var = jnp.mean(d * d, axis=-1, keepdims=True)
    yn = d * jax.lax.rsqrt(var + eps)
    o_ref[0] = (yn * g_ref[0:1, :].astype(jnp.float32)
                + be_ref[0:1, :].astype(jnp.float32)).astype(o_ref.dtype)


# ---------------------------------------------------------------------------
# Kernel 4: FFN (linear1 + ReLU + linear2) + residual + LayerNorm2, fully fused
# so the (tM, 4*D) intermediate never leaves VMEM.
# ---------------------------------------------------------------------------
def _ffn_ln_kernel(x_ref, w1_ref, b1_ref, w2_ref, b2_ref, g_ref, be_ref, o_ref, *, eps):
    x = x_ref[0].astype(jnp.float32)           # (tM, D)
    h = jnp.dot(x, w1_ref[...].astype(jnp.float32),
                preferred_element_type=jnp.float32) + b1_ref[0:1, :].astype(jnp.float32)
    h = jnp.maximum(h, 0.0)
    # TODO(synk): dropout2 / dropout3 (training mode) omitted; eval-mode identity.
    y = jnp.dot(h, w2_ref[...].astype(jnp.float32),
                preferred_element_type=jnp.float32) + b2_ref[0:1, :].astype(jnp.float32)
    y = x + y
    mu = jnp.mean(y, axis=-1, keepdims=True)
    d = y - mu
    var = jnp.mean(d * d, axis=-1, keepdims=True)
    yn = d * jax.lax.rsqrt(var + eps)
    o_ref[0] = (yn * g_ref[0:1, :].astype(jnp.float32)
                + be_ref[0:1, :].astype(jnp.float32)).astype(o_ref.dtype)


# ---------------------------------------------------------------------------
# Wrapper: full CrossTransformer forward
# ---------------------------------------------------------------------------
def cross_transformer_forward(input1, input2, params, *, n_head):
    S, B, D = input1.shape
    H = n_head
    assert D % H == 0, "d_model must be divisible by n_head"
    Dh = D // H
    M = S * B
    BH = B * H
    dtype = input1.dtype

    # Cast parameters once in the wrapper to the activation dtype (saves DMA
    # bytes + per-block converts when running in bf16).
    pr = {name: w.astype(dtype) for name, w in params.items()}
    Dff = pr["w1"].shape[1]

    # Stack both inputs once: (2, S*B, D). Reused for QKV and as residual.
    x12 = jnp.stack([input1.reshape(M, D), input2.reshape(M, D)], axis=0)

    tM = _pick_row_tile(M)
    nM = pl.cdiv(M, tM)

    # ---- 1) dif + Q/K/V projections ------------------------------------------------
    b_in = jnp.concatenate([pr["bq"], pr["bk"], pr["bv"]], axis=0)          # (3, D)
    x12_spec = pl.BlockSpec((2, tM, D), lambda i: (0, i, 0))
    row_spec = pl.BlockSpec((tM, D), lambda i: (i, 0))
    wdd_spec = pl.BlockSpec((D, D), lambda i: (0, 0))       # weights stay resident
    b3_spec = pl.BlockSpec((3, D), lambda i: (0, 0))

    q12, k2d, v2d = pl.pallas_call(
        _qkv_kernel,
        out_shape=(jax.ShapeDtypeStruct((2, M, D), dtype),
                   jax.ShapeDtypeStruct((M, D), dtype),
                   jax.ShapeDtypeStruct((M, D), dtype)),
        grid_spec=pltpu.PrefetchScalarGridSpec(
            num_scalar_prefetch=0,
            grid=(nM,),
            in_specs=[x12_spec, wdd_spec, wdd_spec, wdd_spec, b3_spec],
            out_specs=[x12_spec, row_spec, row_spec],
        ),
        compiler_params=pltpu.CompilerParams(dimension_semantics=("parallel",)),
    )(x12, pr["wq"], pr["wk"], pr["wv"], b_in)

    # ---- head split (layout plumbing in plain JAX) ----------------------------------
    qh = q12.reshape(2, S, B, H, Dh).transpose(0, 2, 3, 1, 4).reshape(2, BH, S, Dh)
    kh = k2d.reshape(S, B, H, Dh).transpose(1, 2, 0, 3).reshape(BH, S, Dh)
    vh = v2d.reshape(S, B, H, Dh).transpose(1, 2, 0, 3).reshape(BH, S, Dh)

    # ---- 2) attention ---------------------------------------------------------------
    q_spec = pl.BlockSpec((1, 1, S, Dh), lambda bh, qi: (qi, bh, 0, 0))
    kv_spec = pl.BlockSpec((1, S, Dh), lambda bh, qi: (bh, 0, 0))
    attn = pl.pallas_call(
        functools.partial(_attn_kernel, scale=1.0 / math.sqrt(Dh)),
        out_shape=jax.ShapeDtypeStruct((2, BH, S, Dh), dtype),
        grid_spec=pltpu.PrefetchScalarGridSpec(
            num_scalar_prefetch=0,
            grid=(BH, 2),                       # inner axis: {input1, input2} queries
            in_specs=[q_spec, kv_spec, kv_spec],
            out_specs=q_spec,
        ),
        compiler_params=pltpu.CompilerParams(
            dimension_semantics=("parallel", "arbitrary")),
    )(qh, kh, vh)

    attn2 = attn.reshape(2, B, H, S, Dh).transpose(0, 3, 1, 2, 4).reshape(2, M, D)

    # ---- 3) out-projection + residual + LayerNorm1 ----------------------------------
    pair_spec = pl.BlockSpec((1, tM, D), lambda qi, i: (qi, i, 0))
    wdd2_spec = pl.BlockSpec((D, D), lambda qi, i: (0, 0))
    vec_spec = pl.BlockSpec((1, D), lambda qi, i: (0, 0))

    y = pl.pallas_call(
        functools.partial(_outproj_ln_kernel, eps=LN_EPS),
        out_shape=jax.ShapeDtypeStruct((2, M, D), dtype),
        grid_spec=pltpu.PrefetchScalarGridSpec(
            num_scalar_prefetch=0,
            grid=(2, nM),
            in_specs=[pair_spec, pair_spec, wdd2_spec, vec_spec, vec_spec, vec_spec],
            out_specs=pair_spec,
        ),
        compiler_params=pltpu.CompilerParams(
            dimension_semantics=("parallel", "parallel")),
    )(attn2, x12, pr["wo"], pr["bo"], pr["ln1_g"], pr["ln1_b"])

    # ---- 4) FFN + residual + LayerNorm2 (aliases y's HBM buffer for the output) -----
    w1_spec = pl.BlockSpec((D, Dff), lambda qi, i: (0, 0))
    bff_spec = pl.BlockSpec((1, Dff), lambda qi, i: (0, 0))
    w2_spec = pl.BlockSpec((Dff, D), lambda qi, i: (0, 0))

    z = pl.pallas_call(
        functools.partial(_ffn_ln_kernel, eps=LN_EPS),
        out_shape=jax.ShapeDtypeStruct((2, M, D), dtype),
        grid_spec=pltpu.PrefetchScalarGridSpec(
            num_scalar_prefetch=0,
            grid=(2, nM),
            in_specs=[pair_spec, w1_spec, bff_spec, w2_spec, vec_spec, vec_spec, vec_spec],
            out_specs=pair_spec,
        ),
        compiler_params=pltpu.CompilerParams(
            dimension_semantics=("parallel", "parallel")),
        input_output_aliases={0: 0},           # y is dead after this call
    )(y, pr["w1"], pr["b1"], pr["w2"], pr["b2"], pr["ln2_g"], pr["ln2_b"])

    return z[0].reshape(S, B, D), z[1].reshape(S, B, D)


# ---------------------------------------------------------------------------
# Parameter init (weights stored as (in, out) for x @ W; matches PyTorch math
# of Linear / MultiheadAttention up to initialization).
# ---------------------------------------------------------------------------
def init_params(key, d_model, d_ff=None, dtype=jnp.float32):
    if d_ff is None:
        d_ff = 4 * d_model
    ks = jax.random.split(key, 16)

    def xavier(k, shape):
        lim = math.sqrt(6.0 / (shape[0] + shape[1]))
        return jax.random.uniform(k, shape, dtype, -lim, lim)

    def small(k, shape):
        return 0.02 * jax.random.normal(k, shape, dtype)

    return {
        "wq": xavier(ks[0], (d_model, d_model)), "bq": small(ks[1], (1, d_model)),
        "wk": xavier(ks[2], (d_model, d_model)), "bk": small(ks[3], (1, d_model)),
        "wv": xavier(ks[4], (d_model, d_model)), "bv": small(ks[5], (1, d_model)),
        "wo": xavier(ks[6], (d_model, d_model)), "bo": small(ks[7], (1, d_model)),
        "ln1_g": jnp.ones((1, d_model), dtype) + small(ks[8], (1, d_model)),
        "ln1_b": small(ks[9], (1, d_model)),
        "w1": xavier(ks[10], (d_model, d_ff)), "b1": small(ks[11], (1, d_ff)),
        "w2": xavier(ks[12], (d_ff, d_model)), "b2": small(ks[13], (1, d_model)),
        "ln2_g": jnp.ones((1, d_model), dtype) + small(ks[14], (1, d_model)),
        "ln2_b": small(ks[15], (1, d_model)),
    }


# ---------------------------------------------------------------------------
# Pure-JAX reference (mirrors the PyTorch module in eval mode)
# ---------------------------------------------------------------------------
def cross_transformer_reference(input1, input2, params, n_head, eps=LN_EPS):
    S, B, D = input1.shape
    H = n_head
    Dh = D // H
    dif = input2 - input1

    def mha(q_in, kv_in):
        q = q_in @ params["wq"] + params["bq"]
        k = kv_in @ params["wk"] + params["bk"]
        v = kv_in @ params["wv"] + params["bv"]

        def split(t):
            return t.reshape(S, B, H, Dh).transpose(1, 2, 0, 3)   # (B,H,S,Dh)

        qh, kh, vh = split(q), split(k), split(v)
        s = jnp.einsum("bhqd,bhkd->bhqk", qh, kh) / math.sqrt(Dh)
        p = jax.nn.softmax(s, axis=-1)
        o = jnp.einsum("bhqk,bhkd->bhqd", p, vh)
        o = o.transpose(2, 0, 1, 3).reshape(S, B, D)
        return o @ params["wo"] + params["bo"]

    def ln(x, g, b):
        mu = x.mean(-1, keepdims=True)
        var = ((x - mu) ** 2).mean(-1, keepdims=True)
        return (x - mu) / jnp.sqrt(var + eps) * g + b

    def cross(x):
        y = ln(x + mha(x, dif), params["ln1_g"], params["ln1_b"])
        h = jnp.maximum(y @ params["w1"] + params["b1"], 0.0)
        f = h @ params["w2"] + params["b2"]
        return ln(y + f, params["ln2_g"], params["ln2_b"])

    return cross(input1), cross(input2)


if __name__ == "__main__":
    key = jax.random.PRNGKey(0)
    k1, k2, kp = jax.random.split(key, 3)

    # Small shapes consistent with the module: seq=8, batch=2, d_model=32, n_head=4
    S, B, D, H = 8, 2, 32, 4
    input1 = jax.random.normal(k1, (S, B, D), dtype=jnp.float32)
    input2 = jax.random.normal(k2, (S, B, D), dtype=jnp.float32)
    params = init_params(kp, D)

    fwd = jax.jit(cross_transformer_forward, static_argnames=("n_head",))
    out1, out2 = fwd(input1, input2, params, n_head=H)
    out1, out2 = jax.block_until_ready((out1, out2))

    ref1, ref2 = cross_transformer_reference(input1, input2, params, H)
    assert out1.shape == (S, B, D) and out2.shape == (S, B, D)
    assert jnp.allclose(out1, ref1, atol=1e-3, rtol=1e-3), "output_1 mismatch vs reference"
    assert jnp.allclose(out2, ref2, atol=1e-3, rtol=1e-3), "output_2 mismatch vs reference"

    print("KERNEL_OK")
</pallas_src>

<mosaic_0001>
module attributes {stable_mosaic.version = 11 : i64} {
  func.func @_qkv_kernel(%arg0: i32, %arg1: memref<2x16x32xf32, #tpu.memory_space<vmem>>, %arg2: memref<32x32xf32, #tpu.memory_space<vmem>>, %arg3: memref<32x32xf32, #tpu.memory_space<vmem>>, %arg4: memref<32x32xf32, #tpu.memory_space<vmem>>, %arg5: memref<3x32xf32, #tpu.memory_space<vmem>>, %arg6: memref<2x16x32xf32, #tpu.memory_space<vmem>>, %arg7: memref<16x32xf32, #tpu.memory_space<vmem>>, %arg8: memref<16x32xf32, #tpu.memory_space<vmem>>) attributes {dimension_semantics = [#tpu.dimension_semantics<parallel>], iteration_bounds = array<i64: 1>, scalar_prefetch = 0 : i64, scratch_operands = 0 : i64, tpu.core_type = #tpu.core_type<tc>, window_params = [{transform_indices = @transform_0, window_bounds = array<i64: 2, 16, 32>}, {pipeline_mode = #tpu.pipeline_mode<synchronous>, transform_indices = @transform_1, window_bounds = array<i64: 32, 32>}, {pipeline_mode = #tpu.pipeline_mode<synchronous>, transform_indices = @transform_2, window_bounds = array<i64: 32, 32>}, {pipeline_mode = #tpu.pipeline_mode<synchronous>, transform_indices = @transform_3, window_bounds = array<i64: 32, 32>}, {pipeline_mode = #tpu.pipeline_mode<synchronous>, transform_indices = @transform_4, window_bounds = array<i64: 3, 32>}, {transform_indices = @transform_5, window_bounds = array<i64: 2, 16, 32>}, {transform_indices = @transform_6, window_bounds = array<i64: 16, 32>}, {transform_indices = @transform_7, window_bounds = array<i64: 16, 32>}]} {
    %c0 = arith.constant 0 : index
    %c0_0 = arith.constant 0 : index
    %c0_1 = arith.constant 0 : index
    %0 = vector.load %arg1[%c0, %c0_0, %c0_1] : memref<2x16x32xf32, #tpu.memory_space<vmem>>, vector<1x16x32xf32>
    %1 = vector.shape_cast %0 : vector<1x16x32xf32> to vector<16x32xf32>
    %c1 = arith.constant 1 : index
    %c0_2 = arith.constant 0 : index
    %c0_3 = arith.constant 0 : index
    %2 = vector.load %arg1[%c1, %c0_2, %c0_3] : memref<2x16x32xf32, #tpu.memory_space<vmem>>, vector<1x16x32xf32>
    %3 = vector.shape_cast %2 : vector<1x16x32xf32> to vector<16x32xf32>
    %4 = arith.subf %3, %1 : vector<16x32xf32>
    %c0_4 = arith.constant 0 : index
    %c0_5 = arith.constant 0 : index
    %5 = vector.load %arg2[%c0_4, %c0_5] : memref<32x32xf32, #tpu.memory_space<vmem>>, vector<32x32xf32>
    %c0_6 = arith.constant 0 : index
    %c0_7 = arith.constant 0 : index
    %6 = vector.load %arg3[%c0_6, %c0_7] : memref<32x32xf32, #tpu.memory_space<vmem>>, vector<32x32xf32>
    %c0_8 = arith.constant 0 : index
    %c0_9 = arith.constant 0 : index
    %7 = vector.load %arg4[%c0_8, %c0_9] : memref<32x32xf32, #tpu.memory_space<vmem>>, vector<32x32xf32>
    %c0_10 = arith.constant 0 : index
    %c0_11 = arith.constant 0 : index
    %8 = vector.load %arg5[%c0_10, %c0_11] : memref<3x32xf32, #tpu.memory_space<vmem>>, vector<1x32xf32>
    %c1_12 = arith.constant 1 : index
    %c0_13 = arith.constant 0 : index
    %9 = vector.load %arg5[%c1_12, %c0_13] : memref<3x32xf32, #tpu.memory_space<vmem>>, vector<1x32xf32>
    %c2 = arith.constant 2 : index
    %c0_14 = arith.constant 0 : index
    %10 = vector.load %arg5[%c2, %c0_14] : memref<3x32xf32, #tpu.memory_space<vmem>>, vector<1x32xf32>
    %cst = arith.constant dense<0.000000e+00> : vector<16x32xf32>
    %11 = tpu.matmul %1, %5, %cst {dimension_numbers = #tpu.dot_dimension_numbers<[1], [0], [0], [1], [0, 0, 1, 1], [], []>} : vector<16x32xf32>, vector<32x32xf32>, vector<16x32xf32> -> vector<16x32xf32>
    %12 = vector.broadcast %8 : vector<1x32xf32> to vector<16x32xf32>
    %13 = arith.addf %11, %12 : vector<16x32xf32>
    %c0_15 = arith.constant 0 : index
    %c0_16 = arith.constant 0 : index
    %c0_17 = arith.constant 0 : index
    %14 = vector.load %arg6[%c0_15, %c0_16, %c0_17] : memref<2x16x32xf32, #tpu.memory_space<vmem>>, vector<1x16x32xf32>
    %15 = vector.shape_cast %14 : vector<1x16x32xf32> to vector<16x32xf32>
    %16 = vector.shape_cast %13 : vector<16x32xf32> to vector<1x16x32xf32>
    tpu.vector_store %arg6[%c0_15, %c0_16, %c0_17], %16 {strides = array<i32>} : memref<2x16x32xf32, #tpu.memory_space<vmem>>, vector<1x16x32xf32>,
    %cst_18 = arith.constant dense<0.000000e+00> : vector<16x32xf32>
    %17 = tpu.matmul %3, %5, %cst_18 {dimension_numbers = #tpu.dot_dimension_numbers<[1], [0], [0], [1], [0, 0, 1, 1], [], []>} : vector<16x32xf32>, vector<32x32xf32>, vector<16x32xf32> -> vector<16x32xf32>
    %18 = vector.broadcast %8 : vector<1x32xf32> to vector<16x32xf32>
    %19 = arith.addf %17, %18 : vector<16x32xf32>
    %c1_19 = arith.constant 1 : index
    %c0_20 = arith.constant 0 : index
    %c0_21 = arith.constant 0 : index
    %20 = vector.load %arg6[%c1_19, %c0_20, %c0_21] : memref<2x16x32xf32, #tpu.memory_space<vmem>>, vector<1x16x32xf32>
    %21 = vector.shape_cast %20 : vector<1x16x32xf32> to vector<16x32xf32>
    %22 = vector.shape_cast %19 : vector<16x32xf32> to vector<1x16x32xf32>
    tpu.vector_store %arg6[%c1_19, %c0_20, %c0_21], %22 {strides = array<i32>} : memref<2x16x32xf32, #tpu.memory_space<vmem>>, vector<1x16x32xf32>,
    %cst_22 = arith.constant dense<0.000000e+00> : vector<16x32xf32>
    %23 = tpu.matmul %4, %6, %cst_22 {dimension_numbers = #tpu.dot_dimension_numbers<[1], [0], [0], [1], [0, 0, 1, 1], [], []>} : vector<16x32xf32>, vector<32x32xf32>, vector<16x32xf32> -> vector<16x32xf32>
    %24 = vector.broadcast %9 : vector<1x32xf32> to vector<16x32xf32>
    %25 = arith.addf %23, %24 : vector<16x32xf32>
    %c0_23 = arith.constant 0 : index
    %c0_24 = arith.constant 0 : index
    %26 = vector.load %arg7[%c0_23, %c0_24] : memref<16x32xf32, #tpu.memory_space<vmem>>, vector<16x32xf32>
    tpu.vector_store %arg7[%c0_23, %c0_24], %25 {strides = array<i32>} : memref<16x32xf32, #tpu.memory_space<vmem>>, vector<16x32xf32>,
    %cst_25 = arith.constant dense<0.000000e+00> : vector<16x32xf32>
    %27 = tpu.matmul %4, %7, %cst_25 {dimension_numbers = #tpu.dot_dimension_numbers<[1], [0], [0], [1], [0, 0, 1, 1], [], []>} : vector<16x32xf32>, vector<32x32xf32>, vector<16x32xf32> -> vector<16x32xf32>
    %28 = vector.broadcast %10 : vector<1x32xf32> to vector<16x32xf32>
    %29 = arith.addf %27, %28 : vector<16x32xf32>
    %c0_26 = arith.constant 0 : index
    %c0_27 = arith.constant 0 : index
    %30 = vector.load %arg8[%c0_26, %c0_27] : memref<16x32xf32, #tpu.memory_space<vmem>>, vector<16x32xf32>
    tpu.vector_store %arg8[%c0_26, %c0_27], %29 {strides = array<i32>} : memref<16x32xf32, #tpu.memory_space<vmem>>, vector<16x32xf32>,
    return
  }
  func.func @transform_0(%arg0: i32) -> (i32, i32, i32) {
    %c0_i32 = arith.constant 0 : i32
    %c0_i32_0 = arith.constant 0 : i32
    %c0_i32_1 = arith.constant 0 : i32
    return %c0_i32, %arg0, %c0_i32_0 : i32, i32, i32
  }
  func.func @transform_1(%arg0: i32) -> (i32, i32) {
    %c0_i32 = arith.constant 0 : i32
    %c0_i32_0 = arith.constant 0 : i32
    %c0_i32_1 = arith.constant 0 : i32
    return %c0_i32, %c0_i32_0 : i32, i32
  }
  func.func @transform_2(%arg0: i32) -> (i32, i32) {
    %c0_i32 = arith.constant 0 : i32
    %c0_i32_0 = arith.constant 0 : i32
    %c0_i32_1 = arith.constant 0 : i32
    return %c0_i32, %c0_i32_0 : i32, i32
  }
  func.func @transform_3(%arg0: i32) -> (i32, i32) {
    %c0_i32 = arith.constant 0 : i32
    %c0_i32_0 = arith.constant 0 : i32
    %c0_i32_1 = arith.constant 0 : i32
    return %c0_i32, %c0_i32_0 : i32, i32
  }
  func.func @transform_4(%arg0: i32) -> (i32, i32) {
    %c0_i32 = arith.constant 0 : i32
    %c0_i32_0 = arith.constant 0 : i32
    %c0_i32_1 = arith.constant 0 : i32
    return %c0_i32, %c0_i32_0 : i32, i32
  }
  func.func @transform_5(%arg0: i32) -> (i32, i32, i32) {
    %c0_i32 = arith.constant 0 : i32
    %c0_i32_0 = arith.constant 0 : i32
    %c0_i32_1 = arith.constant 0 : i32
    return %c0_i32, %arg0, %c0_i32_0 : i32, i32, i32
  }
  func.func @transform_6(%arg0: i32) -> (i32, i32) {
    %c0_i32 = arith.constant 0 : i32
    %c0_i32_0 = arith.constant 0 : i32
    return %arg0, %c0_i32 : i32, i32
  }
  func.func @transform_7(%arg0: i32) -> (i32, i32) {
    %c0_i32 = arith.constant 0 : i32
    %c0_i32_0 = arith.constant 0 : i32
    return %arg0, %c0_i32 : i32, i32
  }
}

module attributes {stable_mosaic.version = 11 : i64} {
  func.func @_attn_kernel(%arg0: i32, %arg1: i32, %arg2: memref<1x1x8x8xf32, #tpu.memory_space<vmem>>, %arg3: memref<1x8x8xf32, #tpu.memory_space<vmem>>, %arg4: memref<1x8x8xf32, #tpu.memory_space<vmem>>, %arg5: memref<1x1x8x8xf32, #tpu.memory_space<vmem>>) attributes {dimension_semantics = [#tpu.dimension_semantics<parallel>, #tpu.dimension_semantics<arbitrary>], iteration_bounds = array<i64: 8, 2>, scalar_prefetch = 0 : i64, scratch_operands = 0 : i64, tpu.core_type = #tpu.core_type<tc>, window_params = [{transform_indices = @transform_0, window_bounds = array<i64: 1, 1, 8, 8>}, {transform_indices = @transform_1, window_bounds = array<i64: 1, 8, 8>}, {transform_indices = @transform_2, window_bounds = array<i64: 1, 8, 8>}, {transform_indices = @transform_3, window_bounds = array<i64: 1, 1, 8, 8>}]} {
    %c0 = arith.constant 0 : index
    %c0_0 = arith.constant 0 : index
    %c0_1 = arith.constant 0 : index
    %c0_2 = arith.constant 0 : index
    %0 = vector.load %arg2[%c0, %c0_0, %c0_1, %c0_2] : memref<1x1x8x8xf32, #tpu.memory_space<vmem>>, vector<1x1x8x8xf32>
    %1 = vector.shape_cast %0 : vector<1x1x8x8xf32> to vector<8x8xf32>
    %c0_3 = arith.constant 0 : index
    %c0_4 = arith.constant 0 : index
    %c0_5 = arith.constant 0 : index
    %2 = vector.load %arg3[%c0_3, %c0_4, %c0_5] : memref<1x8x8xf32, #tpu.memory_space<vmem>>, vector<1x8x8xf32>
    %3 = vector.shape_cast %2 : vector<1x8x8xf32> to vector<8x8xf32>
    %c0_6 = arith.constant 0 : index
    %c0_7 = arith.constant 0 : index
    %c0_8 = arith.constant 0 : index
    %4 = vector.load %arg4[%c0_6, %c0_7, %c0_8] : memref<1x8x8xf32, #tpu.memory_space<vmem>>, vector<1x8x8xf32>
    %5 = vector.shape_cast %4 : vector<1x8x8xf32> to vector<8x8xf32>
    %cst = arith.constant dense<0.000000e+00> : vector<8x8xf32>
    %6 = tpu.matmul %1, %3, %cst {dimension_numbers = #tpu.dot_dimension_numbers<[1], [1], [0], [0], [0, 0, 1, 0], [], []>} : vector<8x8xf32>, vector<8x8xf32>, vector<8x8xf32> -> vector<8x8xf32>
    %cst_9 = arith.constant 0.353553385 : f32
    %7 = vector.broadcast %cst_9 : f32 to vector<8x8xf32>
    %8 = arith.mulf %6, %7 : vector<8x8xf32>
    %cst_10 = arith.constant dense<0xFF800000> : vector<8xf32>
    %9 = vector.multi_reduction <maximumf>, %8, %cst_10 [1] : vector<8x8xf32> to vector<8xf32>
    %10 = vector.shape_cast %9 : vector<8xf32> to vector<8x1xf32>
    %11 = vector.broadcast %10 : vector<8x1xf32> to vector<8x8xf32>
    %12 = arith.subf %8, %11 : vector<8x8xf32>
    %13 = math.exp %12 : vector<8x8xf32>
    %cst_11 = arith.constant dense<0.000000e+00> : vector<8xf32>
    %14 = vector.multi_reduction <add>, %13, %cst_11 [1] : vector<8x8xf32> to vector<8xf32>
    %15 = vector.shape_cast %14 : vector<8xf32> to vector<8x1xf32>
    %16 = vector.broadcast %15 : vector<8x1xf32> to vector<8x8xf32>
    %17 = arith.divf %13, %16 : vector<8x8xf32>
    %cst_12 = arith.constant dense<0.000000e+00> : vector<8x8xf32>
    %18 = tpu.matmul %17, %5, %cst_12 {dimension_numbers = #tpu.dot_dimension_numbers<[1], [0], [0], [1], [0, 0, 1, 1], [], []>} : vector<8x8xf32>, vector<8x8xf32>, vector<8x8xf32> -> vector<8x8xf32>
    %c0_13 = arith.constant 0 : index
    %c0_14 = arith.constant 0 : index
    %c0_15 = arith.constant 0 : index
    %c0_16 = arith.constant 0 : index
    %19 = vector.load %arg5[%c0_13, %c0_14, %c0_15, %c0_16] : memref<1x1x8x8xf32, #tpu.memory_space<vmem>>, vector<1x1x8x8xf32>
    %20 = vector.shape_cast %19 : vector<1x1x8x8xf32> to vector<8x8xf32>
    %21 = vector.shape_cast %18 : vector<8x8xf32> to vector<1x1x8x8xf32>
    tpu.vector_store %arg5[%c0_13, %c0_14, %c0_15, %c0_16], %21 {strides = array<i32>} : memref<1x1x8x8xf32, #tpu.memory_space<vmem>>, vector<1x1x8x8xf32>,
    return
  }
  func.func @transform_0(%arg0: i32, %arg1: i32) -> (i32, i32, i32, i32) {
    %c0_i32 = arith.constant 0 : i32
    %c0_i32_0 = arith.constant 0 : i32
    %c0_i32_1 = arith.constant 0 : i32
    return %arg1, %arg0, %c0_i32, %c0_i32_0 : i32, i32, i32, i32
  }
  func.func @transform_1(%arg0: i32, %arg1: i32) -> (i32, i32, i32) {
    %c0_i32 = arith.constant 0 : i32
    %c0_i32_0 = arith.constant 0 : i32
    %c0_i32_1 = arith.constant 0 : i32
    return %arg0, %c0_i32, %c0_i32_0 : i32, i32, i32
  }
  func.func @transform_2(%arg0: i32, %arg1: i32) -> (i32, i32, i32) {
    %c0_i32 = arith.constant 0 : i32
    %c0_i32_0 = arith.constant 0 : i32
    %c0_i32_1 = arith.constant 0 : i32
    return %arg0, %c0_i32, %c0_i32_0 : i32, i32, i32
  }
  func.func @transform_3(%arg0: i32, %arg1: i32) -> (i32, i32, i32, i32) {
    %c0_i32 = arith.constant 0 : i32
    %c0_i32_0 = arith.constant 0 : i32
    %c0_i32_1 = arith.constant 0 : i32
    return %arg1, %arg0, %c0_i32, %c0_i32_0 : i32, i32, i32, i32
  }
}

module attributes {stable_mosaic.version = 11 : i64} {
  func.func @_outproj_ln_kernel(%arg0: i32, %arg1: i32, %arg2: memref<1x16x32xf32, #tpu.memory_space<vmem>>, %arg3: memref<1x16x32xf32, #tpu.memory_space<vmem>>, %arg4: memref<32x32xf32, #tpu.memory_space<vmem>>, %arg5: memref<1x32xf32, #tpu.memory_space<vmem>>, %arg6: memref<1x32xf32, #tpu.memory_space<vmem>>, %arg7: memref<1x32xf32, #tpu.memory_space<vmem>>, %arg8: memref<1x16x32xf32, #tpu.memory_space<vmem>>) attributes {dimension_semantics = [#tpu.dimension_semantics<parallel>, #tpu.dimension_semantics<parallel>], iteration_bounds = array<i64: 2, 1>, scalar_prefetch = 0 : i64, scratch_operands = 0 : i64, tpu.core_type = #tpu.core_type<tc>, window_params = [{transform_indices = @transform_0, window_bounds = array<i64: 1, 16, 32>}, {transform_indices = @transform_1, window_bounds = array<i64: 1, 16, 32>}, {pipeline_mode = #tpu.pipeline_mode<synchronous>, transform_indices = @transform_2, window_bounds = array<i64: 32, 32>}, {pipeline_mode = #tpu.pipeline_mode<synchronous>, transform_indices = @transform_3, window_bounds = array<i64: 1, 32>}, {pipeline_mode = #tpu.pipeline_mode<synchronous>, transform_indices = @transform_4, window_bounds = array<i64: 1, 32>}, {pipeline_mode = #tpu.pipeline_mode<synchronous>, transform_indices = @transform_5, window_bounds = array<i64: 1, 32>}, {transform_indices = @transform_6, window_bounds = array<i64: 1, 16, 32>}]} {
    %c0 = arith.constant 0 : index
    %c0_0 = arith.constant 0 : index
    %c0_1 = arith.constant 0 : index
    %0 = vector.load %arg2[%c0, %c0_0, %c0_1] : memref<1x16x32xf32, #tpu.memory_space<vmem>>, vector<1x16x32xf32>
    %1 = vector.shape_cast %0 : vector<1x16x32xf32> to vector<16x32xf32>
    %c0_2 = arith.constant 0 : index
    %c0_3 = arith.constant 0 : index
    %c0_4 = arith.constant 0 : index
    %2 = vector.load %arg3[%c0_2, %c0_3, %c0_4] : memref<1x16x32xf32, #tpu.memory_space<vmem>>, vector<1x16x32xf32>
    %3 = vector.shape_cast %2 : vector<1x16x32xf32> to vector<16x32xf32>
    %c0_5 = arith.constant 0 : index
    %c0_6 = arith.constant 0 : index
    %4 = vector.load %arg4[%c0_5, %c0_6] : memref<32x32xf32, #tpu.memory_space<vmem>>, vector<32x32xf32>
    %cst = arith.constant dense<0.000000e+00> : vector<16x32xf32>
    %5 = tpu.matmul %1, %4, %cst {dimension_numbers = #tpu.dot_dimension_numbers<[1], [0], [0], [1], [0, 0, 1, 1], [], []>} : vector<16x32xf32>, vector<32x32xf32>, vector<16x32xf32> -> vector<16x32xf32>
    %c0_7 = arith.constant 0 : index
    %c0_8 = arith.constant 0 : index
    %6 = vector.load %arg5[%c0_7, %c0_8] : memref<1x32xf32, #tpu.memory_space<vmem>>, vector<1x32xf32>
    %7 = vector.broadcast %6 : vector<1x32xf32> to vector<16x32xf32>
    %8 = arith.addf %5, %7 : vector<16x32xf32>
    %9 = arith.addf %3, %8 : vector<16x32xf32>
    %cst_9 = arith.constant dense<0.000000e+00> : vector<16xf32>
    %10 = vector.multi_reduction <add>, %9, %cst_9 [1] : vector<16x32xf32> to vector<16xf32>
    %11 = vector.shape_cast %10 : vector<16xf32> to vector<16x1xf32>
    %cst_10 = arith.constant 3.200000e+01 : f32
    %12 = vector.broadcast %cst_10 : f32 to vector<16x1xf32>
    %13 = arith.divf %11, %12 : vector<16x1xf32>
    %14 = vector.broadcast %13 : vector<16x1xf32> to vector<16x32xf32>
    %15 = arith.subf %9, %14 : vector<16x32xf32>
    %16 = arith.mulf %15, %15 : vector<16x32xf32>
    %cst_11 = arith.constant dense<0.000000e+00> : vector<16xf32>
    %17 = vector.multi_reduction <add>, %16, %cst_11 [1] : vector<16x32xf32> to vector<16xf32>
    %18 = vector.shape_cast %17 : vector<16xf32> to vector<16x1xf32>
    %cst_12 = arith.constant 3.200000e+01 : f32
    %19 = vector.broadcast %cst_12 : f32 to vector<16x1xf32>
    %20 = arith.divf %18, %19 : vector<16x1xf32>
    %cst_13 = arith.constant 9.99999974E-6 : f32
    %21 = vector.broadcast %cst_13 : f32 to vector<16x1xf32>
    %22 = arith.addf %20, %21 : vector<16x1xf32>
    %23 = math.rsqrt %22 : vector<16x1xf32>
    %24 = vector.broadcast %23 : vector<16x1xf32> to vector<16x32xf32>
    %25 = arith.mulf %15, %24 : vector<16x32xf32>
    %c0_14 = arith.constant 0 : index
    %c0_15 = arith.constant 0 : index
    %26 = vector.load %arg6[%c0_14, %c0_15] : memref<1x32xf32, #tpu.memory_space<vmem>>, vector<1x32xf32>
    %27 = vector.broadcast %26 : vector<1x32xf32> to vector<16x32xf32>
    %28 = arith.mulf %25, %27 : vector<16x32xf32>
    %c0_16 = arith.constant 0 : index
    %c0_17 = arith.constant 0 : index
    %29 = vector.load %arg7[%c0_16, %c0_17] : memref<1x32xf32, #tpu.memory_space<vmem>>, vector<1x32xf32>
    %30 = vector.broadcast %29 : vector<1x32xf32> to vector<16x32xf32>
    %31 = arith.addf %28, %30 : vector<16x32xf32>
    %c0_18 = arith.constant 0 : index
    %c0_19 = arith.constant 0 : index
    %c0_20 = arith.constant 0 : index
    %32 = vector.load %arg8[%c0_18, %c0_19, %c0_20] : memref<1x16x32xf32, #tpu.memory_space<vmem>>, vector<1x16x32xf32>
    %33 = vector.shape_cast %32 : vector<1x16x32xf32> to vector<16x32xf32>
    %34 = vector.shape_cast %31 : vector<16x32xf32> to vector<1x16x32xf32>
    tpu.vector_store %arg8[%c0_18, %c0_19, %c0_20], %34 {strides = array<i32>} : memref<1x16x32xf32, #tpu.memory_space<vmem>>, vector<1x16x32xf32>,
    return
  }
  func.func @transform_0(%arg0: i32, %arg1: i32) -> (i32, i32, i32) {
    %c0_i32 = arith.constant 0 : i32
    %c0_i32_0 = arith.constant 0 : i32
    return %arg0, %arg1, %c0_i32 : i32, i32, i32
  }
  func.func @transform_1(%arg0: i32, %arg1: i32) -> (i32, i32, i32) {
    %c0_i32 = arith.constant 0 : i32
    %c0_i32_0 = arith.constant 0 : i32
    return %arg0, %arg1, %c0_i32 : i32, i32, i32
  }
  func.func @transform_2(%arg0: i32, %arg1: i32) -> (i32, i32) {
    %c0_i32 = arith.constant 0 : i32
    %c0_i32_0 = arith.constant 0 : i32
    %c0_i32_1 = arith.constant 0 : i32
    return %c0_i32, %c0_i32_0 : i32, i32
  }
  func.func @transform_3(%arg0: i32, %arg1: i32) -> (i32, i32) {
    %c0_i32 = arith.constant 0 : i32
    %c0_i32_0 = arith.constant 0 : i32
    %c0_i32_1 = arith.constant 0 : i32
    return %c0_i32, %c0_i32_0 : i32, i32
  }
  func.func @transform_4(%arg0: i32, %arg1: i32) -> (i32, i32) {
    %c0_i32 = arith.constant 0 : i32
    %c0_i32_0 = arith.constant 0 : i32
    %c0_i32_1 = arith.constant 0 : i32
    return %c0_i32, %c0_i32_0 : i32, i32
  }
  func.func @transform_5(%arg0: i32, %arg1: i32) -> (i32, i32) {
    %c0_i32 = arith.constant 0 : i32
    %c0_i32_0 = arith.constant 0 : i32
    %c0_i32_1 = arith.constant 0 : i32
    return %c0_i32, %c0_i32_0 : i32, i32
  }
  func.func @transform_6(%arg0: i32, %arg1: i32) -> (i32, i32, i32) {
    %c0_i32 = arith.constant 0 : i32
    %c0_i32_0 = arith.constant 0 : i32
    return %arg0, %arg1, %c0_i32 : i32, i32, i32
  }
}

module attributes {stable_mosaic.version = 11 : i64} {
  func.func @_ffn_ln_kernel(%arg0: i32, %arg1: i32, %arg2: memref<1x16x32xf32, #tpu.memory_space<vmem>>, %arg3: memref<32x128xf32, #tpu.memory_space<vmem>>, %arg4: memref<1x128xf32, #tpu.memory_space<vmem>>, %arg5: memref<128x32xf32, #tpu.memory_space<vmem>>, %arg6: memref<1x32xf32, #tpu.memory_space<vmem>>, %arg7: memref<1x32xf32, #tpu.memory_space<vmem>>, %arg8: memref<1x32xf32, #tpu.memory_space<vmem>>, %arg9: memref<1x16x32xf32, #tpu.memory_space<vmem>>) attributes {dimension_semantics = [#tpu.dimension_semantics<parallel>, #tpu.dimension_semantics<parallel>], iteration_bounds = array<i64: 2, 1>, scalar_prefetch = 0 : i64, scratch_operands = 0 : i64, tpu.core_type = #tpu.core_type<tc>, window_params = [{transform_indices = @transform_0, window_bounds = array<i64: 1, 16, 32>}, {pipeline_mode = #tpu.pipeline_mode<synchronous>, transform_indices = @transform_1, window_bounds = array<i64: 32, 128>}, {pipeline_mode = #tpu.pipeline_mode<synchronous>, transform_indices = @transform_2, window_bounds = array<i64: 1, 128>}, {pipeline_mode = #tpu.pipeline_mode<synchronous>, transform_indices = @transform_3, window_bounds = array<i64: 128, 32>}, {pipeline_mode = #tpu.pipeline_mode<synchronous>, transform_indices = @transform_4, window_bounds = array<i64: 1, 32>}, {pipeline_mode = #tpu.pipeline_mode<synchronous>, transform_indices = @transform_5, window_bounds = array<i64: 1, 32>}, {pipeline_mode = #tpu.pipeline_mode<synchronous>, transform_indices = @transform_6, window_bounds = array<i64: 1, 32>}, {transform_indices = @transform_7, window_bounds = array<i64: 1, 16, 32>}]} {
    %c0 = arith.constant 0 : index
    %c0_0 = arith.constant 0 : index
    %c0_1 = arith.constant 0 : index
    %0 = vector.load %arg2[%c0, %c0_0, %c0_1] : memref<1x16x32xf32, #tpu.memory_space<vmem>>, vector<1x16x32xf32>
    %1 = vector.shape_cast %0 : vector<1x16x32xf32> to vector<16x32xf32>
    %c0_2 = arith.constant 0 : index
    %c0_3 = arith.constant 0 : index
    %2 = vector.load %arg3[%c0_2, %c0_3] : memref<32x128xf32, #tpu.memory_space<vmem>>, vector<32x128xf32>
    %cst = arith.constant dense<0.000000e+00> : vector<16x128xf32>
    %3 = tpu.matmul %1, %2, %cst {dimension_numbers = #tpu.dot_dimension_numbers<[1], [0], [0], [1], [0, 0, 1, 1], [], []>} : vector<16x32xf32>, vector<32x128xf32>, vector<16x128xf32> -> vector<16x128xf32>
    %c0_4 = arith.constant 0 : index
    %c0_5 = arith.constant 0 : index
    %4 = vector.load %arg4[%c0_4, %c0_5] : memref<1x128xf32, #tpu.memory_space<vmem>>, vector<1x128xf32>
    %5 = vector.broadcast %4 : vector<1x128xf32> to vector<16x128xf32>
    %6 = arith.addf %3, %5 : vector<16x128xf32>
    %cst_6 = arith.constant 0.000000e+00 : f32
    %7 = vector.broadcast %cst_6 : f32 to vector<16x128xf32>
    %8 = arith.maximumf %6, %7 : vector<16x128xf32>
    %c0_7 = arith.constant 0 : index
    %c0_8 = arith.constant 0 : index
    %9 = vector.load %arg5[%c0_7, %c0_8] : memref<128x32xf32, #tpu.memory_space<vmem>>, vector<128x32xf32>
    %cst_9 = arith.constant dense<0.000000e+00> : vector<16x32xf32>
    %10 = tpu.matmul %8, %9, %cst_9 {dimension_numbers = #tpu.dot_dimension_numbers<[1], [0], [0], [1], [0, 0, 1, 1], [], []>} : vector<16x128xf32>, vector<128x32xf32>, vector<16x32xf32> -> vector<16x32xf32>
    %c0_10 = arith.constant 0 : index
    %c0_11 = arith.constant 0 : index
    %11 = vector.load %arg6[%c0_10, %c0_11] : memref<1x32xf32, #tpu.memory_space<vmem>>, vector<1x32xf32>
    %12 = vector.broadcast %11 : vector<1x32xf32> to vector<16x32xf32>
    %13 = arith.addf %10, %12 : vector<16x32xf32>
    %14 = arith.addf %1, %13 : vector<16x32xf32>
    %cst_12 = arith.constant dense<0.000000e+00> : vector<16xf32>
    %15 = vector.multi_reduction <add>, %14, %cst_12 [1] : vector<16x32xf32> to vector<16xf32>
    %16 = vector.shape_cast %15 : vector<16xf32> to vector<16x1xf32>
    %cst_13 = arith.constant 3.200000e+01 : f32
    %17 = vector.broadcast %cst_13 : f32 to vector<16x1xf32>
    %18 = arith.divf %16, %17 : vector<16x1xf32>
    %19 = vector.broadcast %18 : vector<16x1xf32> to vector<16x32xf32>
    %20 = arith.subf %14, %19 : vector<16x32xf32>
    %21 = arith.mulf %20, %20 : vector<16x32xf32>
    %cst_14 = arith.constant dense<0.000000e+00> : vector<16xf32>
    %22 = vector.multi_reduction <add>, %21, %cst_14 [1] : vector<16x32xf32> to vector<16xf32>
    %23 = vector.shape_cast %22 : vector<16xf32> to vector<16x1xf32>
    %cst_15 = arith.constant 3.200000e+01 : f32
    %24 = vector.broadcast %cst_15 : f32 to vector<16x1xf32>
    %25 = arith.divf %23, %24 : vector<16x1xf32>
    %cst_16 = arith.constant 9.99999974E-6 : f32
    %26 = vector.broadcast %cst_16 : f32 to vector<16x1xf32>
    %27 = arith.addf %25, %26 : vector<16x1xf32>
    %28 = math.rsqrt %27 : vector<16x1xf32>
    %29 = vector.broadcast %28 : vector<16x1xf32> to vector<16x32xf32>
    %30 = arith.mulf %20, %29 : vector<16x32xf32>
    %c0_17 = arith.constant 0 : index
    %c0_18 = arith.constant 0 : index
    %31 = vector.load %arg7[%c0_17, %c0_18] : memref<1x32xf32, #tpu.memory_space<vmem>>, vector<1x32xf32>
    %32 = vector.broadcast %31 : vector<1x32xf32> to vector<16x32xf32>
    %33 = arith.mulf %30, %32 : vector<16x32xf32>
    %c0_19 = arith.constant 0 : index
    %c0_20 = arith.constant 0 : index
    %34 = vector.load %arg8[%c0_19, %c0_20] : memref<1x32xf32, #tpu.memory_space<vmem>>, vector<1x32xf32>
    %35 = vector.broadcast %34 : vector<1x32xf32> to vector<16x32xf32>
    %36 = arith.addf %33, %35 : vector<16x32xf32>
    %c0_21 = arith.constant 0 : index
    %c0_22 = arith.constant 0 : index
    %c0_23 = arith.constant 0 : index
    %37 = vector.load %arg9[%c0_21, %c0_22, %c0_23] : memref<1x16x32xf32, #tpu.memory_space<vmem>>, vector<1x16x32xf32>
    %38 = vector.shape_cast %37 : vector<1x16x32xf32> to vector<16x32xf32>
    %39 = vector.shape_cast %36 : vector<16x32xf32> to vector<1x16x32xf32>
    tpu.vector_store %arg9[%c0_21, %c0_22, %c0_23], %39 {strides = array<i32>} : memref<1x16x32xf32, #tpu.memory_space<vmem>>, vector<1x16x32xf32>,
    return
  }
  func.func @transform_0(%arg0: i32, %arg1: i32) -> (i32, i32, i32) {
    %c0_i32 = arith.constant 0 : i32
    %c0_i32_0 = arith.constant 0 : i32
    return %arg0, %arg1, %c0_i32 : i32, i32, i32
  }
  func.func @transform_1(%arg0: i32, %arg1: i32) -> (i32, i32) {
    %c0_i32 = arith.constant 0 : i32
    %c0_i32_0 = arith.constant 0 : i32
    %c0_i32_1 = arith.constant 0 : i32
    return %c0_i32, %c0_i32_0 : i32, i32
  }
  func.func @transform_2(%arg0: i32, %arg1: i32) -> (i32, i32) {
    %c0_i32 = arith.constant 0 : i32
    %c0_i32_0 = arith.constant 0 : i32
    %c0_i32_1 = arith.constant 0 : i32
    return %c0_i32, %c0_i32_0 : i32, i32
  }
  func.func @transform_3(%arg0: i32, %arg1: i32) -> (i32, i32) {
    %c0_i32 = arith.constant 0 : i32
    %c0_i32_0 = arith.constant 0 : i32
    %c0_i32_1 = arith.constant 0 : i32
    return %c0_i32, %c0_i32_0 : i32, i32
  }
  func.func @transform_4(%arg0: i32, %arg1: i32) -> (i32, i32) {
    %c0_i32 = arith.constant 0 : i32
    %c0_i32_0 = arith.constant 0 : i32
    %c0_i32_1 = arith.constant 0 : i32
    return %c0_i32, %c0_i32_0 : i32, i32
  }
  func.func @transform_5(%arg0: i32, %arg1: i32) -> (i32, i32) {
    %c0_i32 = arith.constant 0 : i32
    %c0_i32_0 = arith.constant 0 : i32
    %c0_i32_1 = arith.constant 0 : i32
    return %c0_i32, %c0_i32_0 : i32, i32
  }
  func.func @transform_6(%arg0: i32, %arg1: i32) -> (i32, i32) {
    %c0_i32 = arith.constant 0 : i32
    %c0_i32_0 = arith.constant 0 : i32
    %c0_i32_1 = arith.constant 0 : i32
    return %c0_i32, %c0_i32_0 : i32, i32
  }
  func.func @transform_7(%arg0: i32, %arg1: i32) -> (i32, i32, i32) {
    %c0_i32 = arith.constant 0 : i32
    %c0_i32_0 = arith.constant 0 : i32
    return %arg0, %arg1, %c0_i32 : i32, i32, i32
  }
}

</mosaic_0001>

<llo_original>
// kernel: cross_transformer_forward.5
$region0: #{cross_transformer_forward.5}
  #allocation0 [shape = 'u32[]', space=smem, size = 0x4, offset = 0x4, fixed_abs, tag = 'smem constant byte address 0x4 - core index']
  #allocation1 [shape = 'u32[144,128]{1,0:T(1,128)}', space=vmem, size = 0x12000, scoped, tag = 'internal scratch']
  %s0 = inlined_call_operand.vmem [shape: f32[2,8,8,8], index: 0, kind: input, shape index: {}]
  %s1 = inlined_call_operand.vmem [shape: f32[8,8,8], index: 1, kind: input, shape index: {}]
  %s2 = inlined_call_operand.vmem [shape: f32[8,8,8], index: 2, kind: input, shape index: {}]
  %s3 = inlined_call_operand.vmem [shape: f32[2,8,8,8], index: 3, kind: output, shape index: {}]
  %s4 = sld [smem:[#allocation0]]
  $region45: #{cross_transformer_forward.5} parent=0
    _
  %s6 = ssub.s32 1, %s4
  %s7 = scalar_select 0, %s6, %s4
  loop: start=0, step=1, limit=18
  $region2: #{cross_transformer_forward.5} parent=0 // loop_pre_header
    _
  $region3: #{cross_transformer_forward.5} parent=0 // loop_header
    %s9 = sphi 0, %s13
    %p10 = scmp.ge.s32.totalorder %s9, 18
    %s16 = sphi 0, %s28
    %s17 = sphi 0, %s24
    %s18 = sphi 0, %s16
    %s19 = sphi 0, %s17
    %s20 = sphi 0, %s18
    %s21 = sphi 0, %s19
    %s33 = sphi 0, %s35
    %s36 = sphi 0, %s33
    %s37 = sphi 0, %s36
    %s53 = sphi 0, %s37
    %s59 = sphi 0, %s61
    %s62 = sphi 0, %s59
    %s63 = sphi 0, %s62
    %s79 = sphi 0, %s63
    %s85 = sphi 0, %s87
    %s88 = sphi 0, %s85
    %s89 = sphi 0, %s88
    %s105 = sphi 0, %s89
    %s113 = sphi 0, %s115
    %s116 = sphi 0, %s113
    %s117 = sphi 0, %s116
    %s133 = sphi 0, %s117
  $region4: #{cross_transformer_forward.5} parent=0 // loop_header_branch
    %12 = sbr.rel (%p10) target = $region8
  $region5: #{cross_transformer_forward.5} parent=0 // loop_body
    %s14 = ssub.s32 %s9, 1
    %s15 = ssub.s32 %s9, 2
    %s22 = sadd.s32 1, %s17
    %p23 = scmp.ge.s32.totalorder %s22, 2
    %s24 = scalar_select %p23, 0, %s22
    %s25 = sadd.s32 1, %s16
    %s26 = scalar_select %p23, %s25, %s16
    %p27 = scmp.ge.s32.totalorder %s26, 8
    %s28 = scalar_select %p27, 0, %s26
    %s29 = ssub.s32 %s17, %s24
    %s30 = ssub.s32 %s16, %s28
    %s31 = sor.u32 %s29, %s30
    %p32 = scmp.eq.s32.totalorder %s31, 0
    %s34 = sadd.s32 %s33, 1
    %s35 = scalar_select %p32, %s33, %s34
    %p38 = pneg %p32
    %p39 = scmp.eq.s32.totalorder %s9, 15
    %p40 = por %p38, %p39
    %p41 = scmp.ne.s32.totalorder %s33, %s36
    %p42 = scmp.eq.s32.totalorder %s9, 0
    %p43 = por %p41, %p42
    %p44 = scmp.ne.s32.totalorder %s33, %s36
    %p45 = scmp.eq.s32.totalorder %s14, 15
    %p46 = por %p44, %p45
    %p47 = scmp.ne.s32.totalorder %s36, %s37
    %p48 = scmp.eq.s32.totalorder %s14, 0
    %p49 = por %p47, %p48
    %p50 = scmp.ne.s32.totalorder %s36, %s37
    %p51 = scmp.eq.s32.totalorder %s15, 15
    %p52 = por %p50, %p51
    %p54 = scmp.ne.s32.totalorder %s37, %s53
    %p55 = scmp.eq.s32.totalorder %s15, 0
    %p56 = por %p54, %p55
    %s57 = ssub.s32 %s16, %s28
    %p58 = scmp.eq.s32.totalorder %s57, 0
    %s60 = sadd.s32 %s59, 1
    %s61 = scalar_select %p58, %s59, %s60
    %p64 = pneg %p58
    %p65 = scmp.eq.s32.totalorder %s9, 15
    %p66 = por %p64, %p65
    %p67 = scmp.ne.s32.totalorder %s59, %s62
    %p68 = scmp.eq.s32.totalorder %s9, 0
    %p69 = por %p67, %p68
    %p70 = scmp.ne.s32.totalorder %s59, %s62
    %p71 = scmp.eq.s32.totalorder %s14, 15
    %p72 = por %p70, %p71
    %p73 = scmp.ne.s32.totalorder %s62, %s63
    %p74 = scmp.eq.s32.totalorder %s14, 0
    %p75 = por %p73, %p74
    %p76 = scmp.ne.s32.totalorder %s62, %s63
    %p77 = scmp.eq.s32.totalorder %s15, 15
    %p78 = por %p76, %p77
    %p80 = scmp.ne.s32.totalorder %s63, %s79
    %p81 = scmp.eq.s32.totalorder %s15, 0
    %p82 = por %p80, %p81
    %s83 = ssub.s32 %s16, %s28
    %p84 = scmp.eq.s32.totalorder %s83, 0
    %s86 = sadd.s32 %s85, 1
    %s87 = scalar_select %p84, %s85, %s86
    %p90 = pneg %p84
    %p91 = scmp.eq.s32.totalorder %s9, 15
    %p92 = por %p90, %p91
    %p93 = scmp.ne.s32.totalorder %s85, %s88
    %p94 = scmp.eq.s32.totalorder %s9, 0
    %p95 = por %p93, %p94
    %p96 = scmp.ne.s32.totalorder %s85, %s88
    %p97 = scmp.eq.s32.totalorder %s14, 15
    %p98 = por %p96, %p97
    %p99 = scmp.ne.s32.totalorder %s88, %s89
    %p100 = scmp.eq.s32.totalorder %s14, 0
    %p101 = por %p99, %p100
    %p102 = scmp.ne.s32.totalorder %s88, %s89
    %p103 = scmp.eq.s32.totalorder %s15, 15
    %p104 = por %p102, %p103
    %p106 = scmp.ne.s32.totalorder %s89, %s105
    %p107 = scmp.eq.s32.totalorder %s15, 0
    %p108 = por %p106, %p107
    %s109 = ssub.s32 %s17, %s24
    %s110 = ssub.s32 %s16, %s28
    %s111 = sor.u32 %s109, %s110
    %p112 = scmp.eq.s32.totalorder %s111, 0
    %s114 = sadd.s32 %s113, 1
    %s115 = scalar_select %p112, %s113, %s114
    %p118 = pneg %p112
    %p119 = scmp.eq.s32.totalorder %s9, 15
    %p120 = por %p118, %p119
    %p121 = scmp.ne.s32.totalorder %s113, %s116
    %p122 = scmp.eq.s32.totalorder %s9, 0
    %p123 = por %p121, %p122
    %p124 = scmp.ne.s32.totalorder %s113, %s116
    %p125 = scmp.eq.s32.totalorder %s14, 15
    %p126 = por %p124, %p125
    %p127 = scmp.ne.s32.totalorder %s116, %s117
    %p128 = scmp.eq.s32.totalorder %s14, 0
    %p129 = por %p127, %p128
    %p130 = scmp.ne.s32.totalorder %s116, %s117
    %p131 = scmp.eq.s32.totalorder %s15, 15
    %p132 = por %p130, %p131
    %p134 = scmp.ne.s32.totalorder %s117, %s133
    %p135 = scmp.eq.s32.totalorder %s15, 0
    %p136 = por %p134, %p135
    %p137 = scmp.le.s32.totalorder 1, %s9
    %p138 = scmp.lt.s32.totalorder %s9, 17
    %p139 = pnand %p137, %p138
    %p140 = pneg %p139
    // Predicated region
    $region9: #{cross_transformer_forward.5} parent=5 // pred_check
      _
    $region10: #{cross_transformer_forward.5} parent=5 // pred_check_branch
      %142 = sbr.rel (%p139) target = $region12
    $region11: #{cross_transformer_forward.5} parent=5 // pred_region
      %s143 = ssub.s32 %s9, 1
    $region12: #{cross_transformer_forward.5} parent=5 // pred_fallthru
      _
    %p144 = scmp.lt.s32.totalorder %s9, 16
    // Predicated region
    $region13: #{cross_transformer_forward.5} parent=5 // pred_check
      %p145 = pneg %p144
    $region14: #{cross_transformer_forward.5} parent=5 // pred_check_branch
      %147 = sbr.rel (%p145) target = $region16
    $region15: #{cross_transformer_forward.5} parent=5 // pred_region
      // Predicated region
      $region17: #{cross_transformer_forward.5} parent=15 // pred_check
        %p148 = pneg %p43
      $region18: #{cross_transformer_forward.5} parent=15 // pred_check_branch
        %150 = sbr.rel (%p148) target = $region20
      $region19: #{cross_transformer_forward.5} parent=15 // pred_region
        %p151 = scmp.lt.s32.totalorder %s17, 1
        %s152 = scalar_select %p151, %s17, 1
        %p153 = scmp.lt.s32.totalorder %s16, 7
        %s154 = scalar_select %p153, %s16, 7
        %s155 = smul.addr %s152, 8
        %s156 = sadd.s32 %s154, %s155
        %s157 = smul.addr %s156, 8
        %s158 = scalar_lea.vmem %s0, %s157
      $region20: #{cross_transformer_forward.5} parent=15 // pred_fallthru
        _
      // Predicated region
      $region21: #{cross_transformer_forward.5} parent=15 // pred_check
        %p159 = pneg %p69
      $region22: #{cross_transformer_forward.5} parent=15 // pred_check_branch
        %161 = sbr.rel (%p159) target = $region24
      $region23: #{cross_transformer_forward.5} parent=15 // pred_region
        %p162 = scmp.lt.s32.totalorder %s16, 7
        %s163 = scalar_select %p162, %s16, 7
        %s164 = smul.addr %s163, 8
        %s165 = scalar_lea.vmem %s1, %s164
      $region24: #{cross_transformer_forward.5} parent=15 // pred_fallthru
        _
      // Predicated region
      $region25: #{cross_transformer_forward.5} parent=15 // pred_check
        %p166 = pneg %p95
      $region26: #{cross_transformer_forward.5} parent=15 // pred_check_branch
        %168 = sbr.rel (%p166) target = $region28
      $region27: #{cross_transformer_forward.5} parent=15 // pred_region
        %p169 = scmp.lt.s32.totalorder %s16, 7
        %s170 = scalar_select %p169, %s16, 7
        %s171 = smul.addr %s170, 8
        %s172 = scalar_lea.vmem %s2, %s171
      $region28: #{cross_transformer_forward.5} parent=15 // pred_fallthru
        _
    $region16: #{cross_transformer_forward.5} parent=5 // pred_fallthru
      _
    %p173 = scmp.le.s32.totalorder 1, %s9
    %p174 = scmp.lt.s32.totalorder %s9, 17
    %p175 = pnand %p173, %p174
    %p176 = pneg %p175
    // Predicated region
    $region29: #{cross_transformer_forward.5} parent=5 // pred_check
      _
    $region30: #{cross_transformer_forward.5} parent=5 // pred_check_branch
      %178 = sbr.rel (%p175) target = $region32
    $region31: #{cross_transformer_forward.5} parent=5 // pred_region
      %s179 = ssub.s32 %s9, 1
      %p180 = scmp.lt.s32.totalorder %s19, 1
      %s181 = scalar_select %p180, %s19, 1
      %p182 = scmp.lt.s32.totalorder %s18, 7
      %s183 = scalar_select %p182, %s18, 7
      %s184 = smul.addr %s181, 8
      %s185 = sadd.s32 %s183, %s184
      %s186 = smul.addr %s185, 8
      %s187 = scalar_lea.vmem %s0, %s186
      %p188 = pneg %p49
      %p189 = pneg %p46
      %p190 = scmp.lt.s32.totalorder %s18, 7
      %s191 = scalar_select %p190, %s18, 7
      %s192 = smul.addr %s191, 8
      %s193 = scalar_lea.vmem %s1, %s192
      %p194 = pneg %p75
      %p195 = pneg %p72
      %p196 = scmp.lt.s32.totalorder %s18, 7
      %s197 = scalar_select %p196, %s18, 7
      %s198 = smul.addr %s197, 8
      %s199 = scalar_lea.vmem %s2, %s198
      %p200 = pneg %p101
      %p201 = pneg %p98
      %p202 = pneg %p129
      %p203 = pneg %p126
      %p204 = scmp.lt.s32.totalorder %s19, 1
      %s205 = scalar_select %p204, %s19, 1
      %p206 = scmp.lt.s32.totalorder %s18, 7
      %s207 = scalar_select %p206, %s18, 7
      %s208 = smul.addr %s205, 8
      %s209 = sadd.s32 %s207, %s208
      %s210 = smul.addr %s209, 8
      %s211 = scalar_lea.vmem %s3, %s210
      %p212 = scmp.lt.s32.totalorder %s19, 1
      %s213 = scalar_select %p212, %s19, 1
      %p214 = scmp.lt.s32.totalorder %s18, 7
      %s215 = scalar_select %p214, %s18, 7
      %s216 = smul.addr %s213, 8
      %s217 = sadd.s32 %s215, %s216
      %s218 = smul.addr %s217, 8
      %s219 = scalar_lea.vmem %s0, %s218
      %p220 = scmp.lt.s32.totalorder %s18, 7
      %s221 = scalar_select %p220, %s18, 7
      %s222 = smul.addr %s221, 8
      %s223 = scalar_lea.vmem %s1, %s222
      %p224 = scmp.lt.s32.totalorder %s18, 7
      %s225 = scalar_select %p224, %s18, 7
      %s226 = smul.addr %s225, 8
      %s227 = scalar_lea.vmem %s2, %s226
      %p228 = scmp.lt.s32.totalorder %s19, 1
      %s229 = scalar_select %p228, %s19, 1
      %p230 = scmp.lt.s32.totalorder %s18, 7
      %s231 = scalar_select %p230, %s18, 7
      %s232 = smul.addr %s229, 8
      %s233 = sadd.s32 %s231, %s232
      %s234 = smul.addr %s233, 8
      %s235 = scalar_lea.vmem %s3, %s234
      %v236 = vld [vmem:[%s219] sm:$0xff]
      %v237 = vld [vmem:[%s223] sm:$0xff]
      %v238 = vld [vmem:[%s227] sm:$0xff]
      %vm239 = vcmask 64512
      %v241 = vsel %vm239, %v236, 0
      %v244 = vsel %vm239, %v237, 0
      %246 = vmatprep.subr.mxu0 0.0
      %247 = vmatpush1.xpose.msra.mxu0 %v244
      %248 = vmatprep.subr.mxu0 0.0
      %249 = vmatpush1.xpose.msra.mxu0 0.0
      %250 = vmatprep.subr.mxu0 0.0
      %251 = vmatpush1.xpose.msra.mxu0 0.0
      %252 = vmatprep.subr.mxu0 0.0
      %253 = vmatpush1.xpose.msra.mxu0 0.0
      %254 = vmatprep.subr.mxu0 0.0
      %255 = vmatpush1.xpose.msra.mxu0 0.0
      %256 = vmatprep.subr.mxu0 0.0
      %257 = vmatpush1.xpose.msra.mxu0 0.0
      %258 = vmatprep.subr.mxu0 0.0
      %259 = vmatpush1.xpose.msra.mxu0 0.0
      %260 = vmatprep.subr.mxu0 0.0
      %261 = vmatpush1.xpose.msra.mxu0 0.0
      %262 = vmatprep.subr.mxu0 0.0
      %263 = vmatpush1.xpose.msra.mxu0 0.0
      %264 = vmatprep.subr.mxu0 0.0
      %265 = vmatpush1.xpose.msra.mxu0 0.0
      %266 = vmatprep.subr.mxu0 0.0
      %267 = vmatpush1.xpose.msra.mxu0 0.0
      %268 = vmatprep.subr.mxu0 0.0
      %269 = vmatpush1.xpose.msra.mxu0 0.0
      %270 = vmatprep.subr.mxu0 0.0
      %271 = vmatpush1.xpose.msra.mxu0 0.0
      %272 = vmatprep.subr.mxu0 0.0
      %273 = vmatpush1.xpose.msra.mxu0 0.0
      %274 = vmatprep.subr.mxu0 0.0
      %275 = vmatpush1.xpose.msra.mxu0 0.0
      %276 = vmatprep.subr.mxu0 0.0
      %277 = vmatpush1.xpose.msra.mxu0 0.0
      %278 = vmatprep.subr.mxu0 0.0
      %279 = vmatpush1.xpose.msra.mxu0 0.0
      %280 = vmatprep.subr.mxu0 0.0
      %281 = vmatpush1.xpose.msra.mxu0 0.0
      %282 = vmatprep.subr.mxu0 0.0
      %283 = vmatpush1.xpose.msra.mxu0 0.0
      %284 = vmatprep.subr.mxu0 0.0
      %285 = vmatpush1.xpose.msra.mxu0 0.0
      %286 = vmatprep.subr.mxu0 0.0
      %287 = vmatpush1.xpose.msra.mxu0 0.0
      %288 = vmatprep.subr.mxu0 0.0
      %289 = vmatpush1.xpose.msra.mxu0 0.0
      %290 = vmatprep.subr.mxu0 0.0
      %291 = vmatpush1.xpose.msra.mxu0 0.0
      %292 = vmatprep.subr.mxu0 0.0
      %293 = vmatpush1.xpose.msra.mxu0 0.0
      %294 = vmatprep.subr.mxu0 0.0
      %295 = vmatpush1.xpose.msra.mxu0 0.0
      %296 = vmatprep.subr.mxu0 0.0
      %297 = vmatpush1.xpose.msra.mxu0 0.0
      %298 = vmatprep.subr.mxu0 0.0
      %299 = vmatpush1.xpose.msra.mxu0 0.0
      %300 = vmatprep.subr.mxu0 0.0
      %301 = vmatpush1.xpose.msra.mxu0 0.0
      %302 = vmatprep.subr.mxu0 0.0
      %303 = vmatpush1.xpose.msra.mxu0 0.0
      %304 = vmatprep.subr.mxu0 0.0
      %305 = vmatpush1.xpose.msra.mxu0 0.0
      %306 = vmatprep.subr.mxu0 0.0
      %307 = vmatpush1.xpose.msra.mxu0 0.0
      %308 = vmatprep.subr.mxu0 0.0
      %309 = vmatpush1.xpose.msra.mxu0 0.0
      %310 = vmatprep.mubr.f32.mxu0 0.0
      %311 = vmatmul.mubr.f32.gmra.mrb[0].mxu0 %v241
      %v312 = vpop.f32.mrb[0].mxu0
      %v313 = vadd.f32 0.0, %v312
      %v314 = vpop.f32.mrb[0].mxu0
      %315 = vdwg.mxu0
      %v316 = vmul.f32 %v313, 0.35355338
      %v317 = vsel %vm239, %v316, -inf
      %318 = vmax.xlane.f32.xlu0 %v317
      %v319 = vpop.xlane.xlu0 %318
      %v320 = vsub.f32 %v316, %v319
      %v321 = vmul.f32 %v320, 1.442695
      %v322 = vpow.pop %v321
      %v323 = vsel %vm239, %v322, 0.0
      %324 = vadd.xlane.f32.xlu0 %v323
      %v325 = vpop.xlane.xlu0 %324
      %v326 = vrcp.pop %v325
      %v327 = vmul.f32 %v322, %v326
      %v329 = vsel %vm239, %v327, 0
      %331 = vmatprep.subr.mxu0 0.0
      %332 = vmatpush1.msra.mxu0 %v238
      %333 = vmatprep.subr.mxu0 0.0
      %334 = vmatpush1.msra.mxu0 0.0
      %335 = vmatprep.subr.mxu0 0.0
      %336 = vmatpush1.msra.mxu0 0.0
      %337 = vmatprep.subr.mxu0 0.0
      %338 = vmatpush1.msra.mxu0 0.0
      %339 = vmatprep.subr.mxu0 0.0
      %340 = vmatpush1.msra.mxu0 0.0
      %341 = vmatprep.subr.mxu0 0.0
      %342 = vmatpush1.msra.mxu0 0.0
      %343 = vmatprep.subr.mxu0 0.0
      %344 = vmatpush1.msra.mxu0 0.0
      %345 = vmatprep.subr.mxu0 0.0
      %346 = vmatpush1.msra.mxu0 0.0
      %347 = vmatprep.subr.mxu0 0.0
      %348 = vmatpush1.msra.mxu0 0.0
      %349 = vmatprep.subr.mxu0 0.0
      %350 = vmatpush1.msra.mxu0 0.0
      %351 = vmatprep.subr.mxu0 0.0
      %352 = vmatpush1.msra.mxu0 0.0
      %353 = vmatprep.subr.mxu0 0.0
      %354 = vmatpush1.msra.mxu0 0.0
      %355 = vmatprep.subr.mxu0 0.0
      %356 = vmatpush1.msra.mxu0 0.0
      %357 = vmatprep.subr.mxu0 0.0
      %358 = vmatpush1.msra.mxu0 0.0
      %359 = vmatprep.subr.mxu0 0.0
      %360 = vmatpush1.msra.mxu0 0.0
      %361 = vmatprep.subr.mxu0 0.0
      %362 = vmatpush1.msra.mxu0 0.0
      %363 = vmatprep.subr.mxu0 0.0
      %364 = vmatpush1.msra.mxu0 0.0
      %365 = vmatprep.subr.mxu0 0.0
      %366 = vmatpush1.msra.mxu0 0.0
      %367 = vmatprep.subr.mxu0 0.0
      %368 = vmatpush1.msra.mxu0 0.0
      %369 = vmatprep.subr.mxu0 0.0
      %370 = vmatpush1.msra.mxu0 0.0
      %371 = vmatprep.subr.mxu0 0.0
      %372 = vmatpush1.msra.mxu0 0.0
      %373 = vmatprep.subr.mxu0 0.0
      %374 = vmatpush1.msra.mxu0 0.0
      %375 = vmatprep.subr.mxu0 0.0
      %376 = vmatpush1.msra.mxu0 0.0
      %377 = vmatprep.subr.mxu0 0.0
      %378 = vmatpush1.msra.mxu0 0.0
      %379 = vmatprep.subr.mxu0 0.0
      %380 = vmatpush1.msra.mxu0 0.0
      %381 = vmatprep.subr.mxu0 0.0
      %382 = vmatpush1.msra.mxu0 0.0
      %383 = vmatprep.subr.mxu0 0.0
      %384 = vmatpush1.msra.mxu0 0.0
      %385 = vmatprep.subr.mxu0 0.0
      %386 = vmatpush1.msra.mxu0 0.0
      %387 = vmatprep.subr.mxu0 0.0
      %388 = vmatpush1.msra.mxu0 0.0
      %389 = vmatprep.subr.mxu0 0.0
      %390 = vmatpush1.msra.mxu0 0.0
      %391 = vmatprep.subr.mxu0 0.0
      %392 = vmatpush1.msra.mxu0 0.0
      %393 = vmatprep.subr.mxu0 0.0
      %394 = vmatpush1.msra.mxu0 0.0
      %395 = vmatprep.mubr.f32.mxu0 0.0
      %396 = vmatmul.mubr.f32.gmra.mrb[0].mxu0 %v329
      %v397 = vpop.f32.mrb[0].mxu0
      %v398 = vadd.f32 0.0, %v397
      %v399 = vpop.f32.mrb[0].mxu0
      %400 = vdwg.mxu0
      %401 = vst.msk [vmem:[%s235] sm:$0xff] %vm239, %v398
      %p402 = scmp.lt.s32.totalorder %s19, 1
      %s403 = scalar_select %p402, %s19, 1
      %p404 = scmp.lt.s32.totalorder %s18, 7
      %s405 = scalar_select %p404, %s18, 7
      %s406 = smul.addr %s403, 8
      %s407 = sadd.s32 %s405, %s406
      %s408 = smul.addr %s407, 8
      %s409 = scalar_lea.vmem %s3, %s408
      // Predicated region
      $region33: #{cross_transformer_forward.5} parent=31 // pred_check
        %p410 = pneg %p126
      $region34: #{cross_transformer_forward.5} parent=31 // pred_check_branch
        %412 = sbr.rel (%p410) target = $region36
      $region35: #{cross_transformer_forward.5} parent=31 // pred_region
        _
      $region36: #{cross_transformer_forward.5} parent=31 // pred_fallthru
        _
    $region32: #{cross_transformer_forward.5} parent=5 // pred_fallthru
      _
    %p413 = scmp.le.s32.totalorder 2, %s9
    // Predicated region
    $region37: #{cross_transformer_forward.5} parent=5 // pred_check
      %p414 = pneg %p413
    $region38: #{cross_transformer_forward.5} parent=5 // pred_check_branch
      %416 = sbr.rel (%p414) target = $region40
    $region39: #{cross_transformer_forward.5} parent=5 // pred_region
      %s417 = ssub.s32 %s9, 2
      // Predicated region
      $region41: #{cross_transformer_forward.5} parent=39 // pred_check
        %p418 = pneg %p132
      $region42: #{cross_transformer_forward.5} parent=39 // pred_check_branch
        %420 = sbr.rel (%p418) target = $region44
      $region43: #{cross_transformer_forward.5} parent=39 // pred_region
        %p421 = scmp.lt.s32.totalorder %s21, 1
        %s422 = scalar_select %p421, %s21, 1
        %p423 = scmp.lt.s32.totalorder %s20, 7
        %s424 = scalar_select %p423, %s20, 7
        %s425 = smul.addr %s422, 8
        %s426 = sadd.s32 %s424, %s425
        %s427 = smul.addr %s426, 8
        %s428 = scalar_lea.vmem %s3, %s427
      $region44: #{cross_transformer_forward.5} parent=39 // pred_fallthru
        _
    $region40: #{cross_transformer_forward.5} parent=5 // pred_fallthru
      _
  $region6: #{cross_transformer_forward.5} parent=0 // loop_footer
    %s13 = sadd.s32 1, %s9
  $region7: #{cross_transformer_forward.5} parent=0 // loop_footer_branch
    %8 = sbr.rel target = $region3
  $region8: #{cross_transformer_forward.5} parent=0 // loop_exit
    _

// kernel: cross_transformer_forward.4
$region0: #{cross_transformer_forward.4}
  #allocation0 [shape = 'u32[]', space=smem, size = 0x4, offset = 0x4, fixed_abs, tag = 'smem constant byte address 0x4 - core index']
  #allocation1 [shape = 'u32[144,128]{1,0:T(1,128)}', space=vmem, size = 0x12000, scoped, tag = 'internal scratch']
  %s0 = inlined_call_operand.vmem [shape: f32[2,16,32], index: 0, kind: input, shape index: {}]
  %s1 = inlined_call_operand.vmem [shape: f32[32,32], index: 1, kind: input, shape index: {}]
  %s2 = inlined_call_operand.vmem [shape: f32[32,32], index: 2, kind: input, shape index: {}]
  %s3 = inlined_call_operand.vmem [shape: f32[32,32], index: 3, kind: input, shape index: {}]
  %s4 = inlined_call_operand.vmem [shape: f32[3,32], index: 4, kind: input, shape index: {}]
  %s5 = inlined_call_operand.vmem [shape: f32[2,16,32], index: 5, kind: output, shape index: {0}]
  %s6 = inlined_call_operand.vmem [shape: f32[16,32], index: 6, kind: output, shape index: {1}]
  %s7 = inlined_call_operand.vmem [shape: f32[16,32], index: 7, kind: output, shape index: {2}]
  %8 = xla_tuple %s5, %s6, %s7
  %s9 = sld [smem:[#allocation0]]
  $region46: #{cross_transformer_forward.4} parent=0
    _
  %s11 = ssub.s32 1, %s9
  %s12 = scalar_select 0, %s11, %s9
  // Predicated region
  $region2: #{cross_transformer_forward.4} parent=0 // pred_check
    _
  $region3: #{cross_transformer_forward.4} parent=0 // pred_check_branch
    %14 = sbr.rel (0) target = $region5
  $region4: #{cross_transformer_forward.4} parent=0 // pred_region
    _
  $region5: #{cross_transformer_forward.4} parent=0 // pred_fallthru
    _
  // Predicated region
  $region6: #{cross_transformer_forward.4} parent=0 // pred_check
    _
  $region7: #{cross_transformer_forward.4} parent=0 // pred_check_branch
    %16 = sbr.rel (0) target = $region9
  $region8: #{cross_transformer_forward.4} parent=0 // pred_region
    _
  $region9: #{cross_transformer_forward.4} parent=0 // pred_fallthru
    _
  // Predicated region
  $region10: #{cross_transformer_forward.4} parent=0 // pred_check
    _
  $region11: #{cross_transformer_forward.4} parent=0 // pred_check_branch
    %18 = sbr.rel (0) target = $region13
  $region12: #{cross_transformer_forward.4} parent=0 // pred_region
    _
  $region13: #{cross_transformer_forward.4} parent=0 // pred_fallthru
    _
  // Predicated region
  $region14: #{cross_transformer_forward.4} parent=0 // pred_check
    _
  $region15: #{cross_transformer_forward.4} parent=0 // pred_check_branch
    %20 = sbr.rel (0) target = $region17
  $region16: #{cross_transformer_forward.4} parent=0 // pred_region
    _
  $region17: #{cross_transformer_forward.4} parent=0 // pred_fallthru
    _
  // Predicated region
  $region18: #{cross_transformer_forward.4} parent=0 // pred_check
    _
  $region19: #{cross_transformer_forward.4} parent=0 // pred_check_branch
    %22 = sbr.rel (0) target = $region21
  $region20: #{cross_transformer_forward.4} parent=0 // pred_region
    _
  $region21: #{cross_transformer_forward.4} parent=0 // pred_fallthru
    _
  %v23 = vld [vmem:[%s0] sm:$0xff]
  %v24 = vld [vmem:[%s0 + $0x8] sm:$0xff]
  %s25 = scalar_lea.vmem %s0, 16
  %v26 = vld [vmem:[%s25] sm:$0xff]
  %v27 = vld [vmem:[%s25 + $0x8] sm:$0xff]
  %v28 = vsub.f32 %v26, %v23
  %v29 = vsub.f32 %v27, %v24
  %v30 = vld [vmem:[%s1] sm:$0xff]
  %v31 = vld [vmem:[%s1 + $0x8] sm:$0xff]
  %v32 = vld [vmem:[%s1 + $0x10] sm:$0xff]
  %v33 = vld [vmem:[%s1 + $0x18] sm:$0xff]
  %v34 = vld [vmem:[%s2] sm:$0xff]
  %v35 = vld [vmem:[%s2 + $0x8] sm:$0xff]
  %v36 = vld [vmem:[%s2 + $0x10] sm:$0xff]
  %v37 = vld [vmem:[%s2 + $0x18] sm:$0xff]
  %v38 = vld [vmem:[%s3] sm:$0xff]
  %v39 = vld [vmem:[%s3 + $0x8] sm:$0xff]
  %v40 = vld [vmem:[%s3 + $0x10] sm:$0xff]
  %v41 = vld [vmem:[%s3 + $0x18] sm:$0xff]
  %v42 = vld [vmem:[%s4] sm:$0x1]
  %v43 = vld [vmem:[%s4 + $0x1] sm:$0x1]
  %v44 = vld [vmem:[%s4 + $0x2] sm:$0x1]
  %v45 = vlaneseq
  %v46 = vshrl.u32 %v45, 7
  %v47 = vsub.s32 0, %v46
  %v48 = vrot.slane %v42, %v47
  %vm49 = vcmask 261120
  %v51 = vsel %vm49, %v23, 0
  %v54 = vsel %vm49, %v24, 0
  %56 = vmatprep.subr.mxu0 0.0
  %57 = vmatpush1.msra.mxu0 %v30
  %58 = vmatprep.subr.mxu0 0.0
  %59 = vmatpush1.msra.mxu0 %v31
  %60 = vmatprep.subr.mxu0 0.0
  %61 = vmatpush1.msra.mxu0 %v32
  %62 = vmatprep.subr.mxu0 0.0
  %63 = vmatpush1.msra.mxu0 %v33
  %64 = vmatprep.subr.mxu0 0.0
  %65 = vmatpush1.msra.mxu0 0.0
  %66 = vmatprep.subr.mxu0 0.0
  %67 = vmatpush1.msra.mxu0 0.0
  %68 = vmatprep.subr.mxu0 0.0
  %69 = vmatpush1.msra.mxu0 0.0
  %70 = vmatprep.subr.mxu0 0.0
  %71 = vmatpush1.msra.mxu0 0.0
  %72 = vmatprep.subr.mxu0 0.0
  %73 = vmatpush1.msra.mxu0 0.0
  %74 = vmatprep.subr.mxu0 0.0
  %75 = vmatpush1.msra.mxu0 0.0
  %76 = vmatprep.subr.mxu0 0.0
  %77 = vmatpush1.msra.mxu0 0.0
  %78 = vmatprep.subr.mxu0 0.0
  %79 = vmatpush1.msra.mxu0 0.0
  %80 = vmatprep.subr.mxu0 0.0
  %81 = vmatpush1.msra.mxu0 0.0
  %82 = vmatprep.subr.mxu0 0.0
  %83 = vmatpush1.msra.mxu0 0.0
  %84 = vmatprep.subr.mxu0 0.0
  %85 = vmatpush1.msra.mxu0 0.0
  %86 = vmatprep.subr.mxu0 0.0
  %87 = vmatpush1.msra.mxu0 0.0
  %88 = vmatprep.subr.mxu0 0.0
  %89 = vmatpush1.msra.mxu0 0.0
  %90 = vmatprep.subr.mxu0 0.0
  %91 = vmatpush1.msra.mxu0 0.0
  %92 = vmatprep.subr.mxu0 0.0
  %93 = vmatpush1.msra.mxu0 0.0
  %94 = vmatprep.subr.mxu0 0.0
  %95 = vmatpush1.msra.mxu0 0.0
  %96 = vmatprep.subr.mxu0 0.0
  %97 = vmatpush1.msra.mxu0 0.0
  %98 = vmatprep.subr.mxu0 0.0
  %99 = vmatpush1.msra.mxu0 0.0
  %100 = vmatprep.subr.mxu0 0.0
  %101 = vmatpush1.msra.mxu0 0.0
  %102 = vmatprep.subr.mxu0 0.0
  %103 = vmatpush1.msra.mxu0 0.0
  %104 = vmatprep.subr.mxu0 0.0
  %105 = vmatpush1.msra.mxu0 0.0
  %106 = vmatprep.subr.mxu0 0.0
  %107 = vmatpush1.msra.mxu0 0.0
  %108 = vmatprep.subr.mxu0 0.0
  %109 = vmatpush1.msra.mxu0 0.0
  %110 = vmatprep.subr.mxu0 0.0
  %111 = vmatpush1.msra.mxu0 0.0
  %112 = vmatprep.subr.mxu0 0.0
  %113 = vmatpush1.msra.mxu0 0.0
  %114 = vmatprep.subr.mxu0 0.0
  %115 = vmatpush1.msra.mxu0 0.0
  %116 = vmatprep.subr.mxu0 0.0
  %117 = vmatpush1.msra.mxu0 0.0
  %118 = vmatprep.subr.mxu0 0.0
  %119 = vmatpush1.msra.mxu0 0.0
  %120 = vmatprep.mubr.f32.mxu0 0.0
  %121 = vmatmul.mubr.f32.gmra.mrb[0].mxu0 %v51
  %v122 = vpop.f32.mrb[0].mxu0
  %v123 = vadd.f32 %v48, %v122
  %v124 = vpop.f32.mrb[0].mxu0
  %125 = vmatprep.mubr.f32.mxu0 0.0
  %126 = vmatmul.mubr.f32.gmra.mrb[0].mxu0 %v54
  %v127 = vpop.f32.mrb[0].mxu0
  %v128 = vadd.f32 %v48, %v127
  %v129 = vpop.f32.mrb[0].mxu0
  %130 = vdwg.mxu0
  %131 = vst.msk [vmem:[%s5] sm:$0xff] %vm49, %v123
  %132 = vst.msk [vmem:[%s5 + $0x8] sm:$0xff] %vm49, %v128
  %v134 = vsel %vm49, %v26, 0
  %v137 = vsel %vm49, %v27, 0
  %139 = vmatprep.subr.mxu0 0.0
  %140 = vmatpush1.msra.mxu0 %v30
  %141 = vmatprep.subr.mxu0 0.0
  %142 = vmatpush1.msra.mxu0 %v31
  %143 = vmatprep.subr.mxu0 0.0
  %144 = vmatpush1.msra.mxu0 %v32
  %145 = vmatprep.subr.mxu0 0.0
  %146 = vmatpush1.msra.mxu0 %v33
  %147 = vmatprep.subr.mxu0 0.0
  %148 = vmatpush1.msra.mxu0 0.0
  %149 = vmatprep.subr.mxu0 0.0
  %150 = vmatpush1.msra.mxu0 0.0
  %151 = vmatprep.subr.mxu0 0.0
  %152 = vmatpush1.msra.mxu0 0.0
  %153 = vmatprep.subr.mxu0 0.0
  %154 = vmatpush1.msra.mxu0 0.0
  %155 = vmatprep.subr.mxu0 0.0
  %156 = vmatpush1.msra.mxu0 0.0
  %157 = vmatprep.subr.mxu0 0.0
  %158 = vmatpush1.msra.mxu0 0.0
  %159 = vmatprep.subr.mxu0 0.0
  %160 = vmatpush1.msra.mxu0 0.0
  %161 = vmatprep.subr.mxu0 0.0
  %162 = vmatpush1.msra.mxu0 0.0
  %163 = vmatprep.subr.mxu0 0.0
  %164 = vmatpush1.msra.mxu0 0.0
  %165 = vmatprep.subr.mxu0 0.0
  %166 = vmatpush1.msra.mxu0 0.0
  %167 = vmatprep.subr.mxu0 0.0
  %168 = vmatpush1.msra.mxu0 0.0
  %169 = vmatprep.subr.mxu0 0.0
  %170 = vmatpush1.msra.mxu0 0.0
  %171 = vmatprep.subr.mxu0 0.0
  %172 = vmatpush1.msra.mxu0 0.0
  %173 = vmatprep.subr.mxu0 0.0
  %174 = vmatpush1.msra.mxu0 0.0
  %175 = vmatprep.subr.mxu0 0.0
  %176 = vmatpush1.msra.mxu0 0.0
  %177 = vmatprep.subr.mxu0 0.0
  %178 = vmatpush1.msra.mxu0 0.0
  %179 = vmatprep.subr.mxu0 0.0
  %180 = vmatpush1.msra.mxu0 0.0
  %181 = vmatprep.subr.mxu0 0.0
  %182 = vmatpush1.msra.mxu0 0.0
  %183 = vmatprep.subr.mxu0 0.0
  %184 = vmatpush1.msra.mxu0 0.0
  %185 = vmatprep.subr.mxu0 0.0
  %186 = vmatpush1.msra.mxu0 0.0
  %187 = vmatprep.subr.mxu0 0.0
  %188 = vmatpush1.msra.mxu0 0.0
  %189 = vmatprep.subr.mxu0 0.0
  %190 = vmatpush1.msra.mxu0 0.0
  %191 = vmatprep.subr.mxu0 0.0
  %192 = vmatpush1.msra.mxu0 0.0
  %193 = vmatprep.subr.mxu0 0.0
  %194 = vmatpush1.msra.mxu0 0.0
  %195 = vmatprep.subr.mxu0 0.0
  %196 = vmatpush1.msra.mxu0 0.0
  %197 = vmatprep.subr.mxu0 0.0
  %198 = vmatpush1.msra.mxu0 0.0
  %199 = vmatprep.subr.mxu0 0.0
  %200 = vmatpush1.msra.mxu0 0.0
  %201 = vmatprep.subr.mxu0 0.0
  %202 = vmatpush1.msra.mxu0 0.0
  %203 = vmatprep.mubr.f32.mxu0 0.0
  %204 = vmatmul.mubr.f32.gmra.mrb[0].mxu0 %v134
  %v205 = vpop.f32.mrb[0].mxu0
  %v206 = vadd.f32 %v48, %v205
  %v207 = vpop.f32.mrb[0].mxu0
  %208 = vmatprep.mubr.f32.mxu0 0.0
  %209 = vmatmul.mubr.f32.gmra.mrb[0].mxu0 %v137
  %v210 = vpop.f32.mrb[0].mxu0
  %v211 = vadd.f32 %v48, %v210
  %v212 = vpop.f32.mrb[0].mxu0
  %213 = vdwg.mxu0
  %s214 = scalar_lea.vmem %s5, 16
  %215 = vst.msk [vmem:[%s214] sm:$0xff] %vm49, %v206
  %216 = vst.msk [vmem:[%s214 + $0x8] sm:$0xff] %vm49, %v211
  %v217 = vlaneseq
  %v218 = vshrl.u32 %v217, 7
  %v219 = vsub.s32 0, %v218
  %v220 = vrot.slane %v43, %v219
  %v222 = vsel %vm49, %v28, 0
  %v225 = vsel %vm49, %v29, 0
  %227 = vmatprep.subr.mxu0 0.0
  %228 = vmatpush1.msra.mxu0 %v34
  %229 = vmatprep.subr.mxu0 0.0
  %230 = vmatpush1.msra.mxu0 %v35
  %231 = vmatprep.subr.mxu0 0.0
  %232 = vmatpush1.msra.mxu0 %v36
  %233 = vmatprep.subr.mxu0 0.0
  %234 = vmatpush1.msra.mxu0 %v37
  %235 = vmatprep.subr.mxu0 0.0
  %236 = vmatpush1.msra.mxu0 0.0
  %237 = vmatprep.subr.mxu0 0.0
  %238 = vmatpush1.msra.mxu0 0.0
  %239 = vmatprep.subr.mxu0 0.0
  %240 = vmatpush1.msra.mxu0 0.0
  %241 = vmatprep.subr.mxu0 0.0
  %242 = vmatpush1.msra.mxu0 0.0
  %243 = vmatprep.subr.mxu0 0.0
  %244 = vmatpush1.msra.mxu0 0.0
  %245 = vmatprep.subr.mxu0 0.0
  %246 = vmatpush1.msra.mxu0 0.0
  %247 = vmatprep.subr.mxu0 0.0
  %248 = vmatpush1.msra.mxu0 0.0
  %249 = vmatprep.subr.mxu0 0.0
  %250 = vmatpush1.msra.mxu0 0.0
  %251 = vmatprep.subr.mxu0 0.0
  %252 = vmatpush1.msra.mxu0 0.0
  %253 = vmatprep.subr.mxu0 0.0
  %254 = vmatpush1.msra.mxu0 0.0
  %255 = vmatprep.subr.mxu0 0.0
  %256 = vmatpush1.msra.mxu0 0.0
  %257 = vmatprep.subr.mxu0 0.0
  %258 = vmatpush1.msra.mxu0 0.0
  %259 = vmatprep.subr.mxu0 0.0
  %260 = vmatpush1.msra.mxu0 0.0
  %261 = vmatprep.subr.mxu0 0.0
  %262 = vmatpush1.msra.mxu0 0.0
  %263 = vmatprep.subr.mxu0 0.0
  %264 = vmatpush1.msra.mxu0 0.0
  %265 = vmatprep.subr.mxu0 0.0
  %266 = vmatpush1.msra.mxu0 0.0
  %267 = vmatprep.subr.mxu0 0.0
  %268 = vmatpush1.msra.mxu0 0.0
  %269 = vmatprep.subr.mxu0 0.0
  %270 = vmatpush1.msra.mxu0 0.0
  %271 = vmatprep.subr.mxu0 0.0
  %272 = vmatpush1.msra.mxu0 0.0
  %273 = vmatprep.subr.mxu0 0.0
  %274 = vmatpush1.msra.mxu0 0.0
  %275 = vmatprep.subr.mxu0 0.0
  %276 = vmatpush1.msra.mxu0 0.0
  %277 = vmatprep.subr.mxu0 0.0
  %278 = vmatpush1.msra.mxu0 0.0
  %279 = vmatprep.subr.mxu0 0.0
  %280 = vmatpush1.msra.mxu0 0.0
  %281 = vmatprep.subr.mxu0 0.0
  %282 = vmatpush1.msra.mxu0 0.0
  %283 = vmatprep.subr.mxu0 0.0
  %284 = vmatpush1.msra.mxu0 0.0
  %285 = vmatprep.subr.mxu0 0.0
  %286 = vmatpush1.msra.mxu0 0.0
  %287 = vmatprep.subr.mxu0 0.0
  %288 = vmatpush1.msra.mxu0 0.0
  %289 = vmatprep.subr.mxu0 0.0
  %290 = vmatpush1.msra.mxu0 0.0
  %291 = vmatprep.mubr.f32.mxu0 0.0
  %292 = vmatmul.mubr.f32.gmra.mrb[0].mxu0 %v222
  %v293 = vpop.f32.mrb[0].mxu0
  %v294 = vadd.f32 %v220, %v293
  %v295 = vpop.f32.mrb[0].mxu0
  %296 = vmatprep.mubr.f32.mxu0 0.0
  %297 = vmatmul.mubr.f32.gmra.mrb[0].mxu0 %v225
  %v298 = vpop.f32.mrb[0].mxu0
  %v299 = vadd.f32 %v220, %v298
  %v300 = vpop.f32.mrb[0].mxu0
  %301 = vdwg.mxu0
  %302 = vst.msk [vmem:[%s6] sm:$0xff] %vm49, %v294
  %303 = vst.msk [vmem:[%s6 + $0x8] sm:$0xff] %vm49, %v299
  %v304 = vlaneseq
  %v305 = vshrl.u32 %v304, 7
  %v306 = vsub.s32 0, %v305
  %v307 = vrot.slane %v44, %v306
  %308 = vmatprep.subr.mxu0 0.0
  %309 = vmatpush1.msra.mxu0 %v38
  %310 = vmatprep.subr.mxu0 0.0
  %311 = vmatpush1.msra.mxu0 %v39
  %312 = vmatprep.subr.mxu0 0.0
  %313 = vmatpush1.msra.mxu0 %v40
  %314 = vmatprep.subr.mxu0 0.0
  %315 = vmatpush1.msra.mxu0 %v41
  %316 = vmatprep.subr.mxu0 0.0
  %317 = vmatpush1.msra.mxu0 0.0
  %318 = vmatprep.subr.mxu0 0.0
  %319 = vmatpush1.msra.mxu0 0.0
  %320 = vmatprep.subr.mxu0 0.0
  %321 = vmatpush1.msra.mxu0 0.0
  %322 = vmatprep.subr.mxu0 0.0
  %323 = vmatpush1.msra.mxu0 0.0
  %324 = vmatprep.subr.mxu0 0.0
  %325 = vmatpush1.msra.mxu0 0.0
  %326 = vmatprep.subr.mxu0 0.0
  %327 = vmatpush1.msra.mxu0 0.0
  %328 = vmatprep.subr.mxu0 0.0
  %329 = vmatpush1.msra.mxu0 0.0
  %330 = vmatprep.subr.mxu0 0.0
  %331 = vmatpush1.msra.mxu0 0.0
  %332 = vmatprep.subr.mxu0 0.0
  %333 = vmatpush1.msra.mxu0 0.0
  %334 = vmatprep.subr.mxu0 0.0
  %335 = vmatpush1.msra.mxu0 0.0
  %336 = vmatprep.subr.mxu0 0.0
  %337 = vmatpush1.msra.mxu0 0.0
  %338 = vmatprep.subr.mxu0 0.0
  %339 = vmatpush1.msra.mxu0 0.0
  %340 = vmatprep.subr.mxu0 0.0
  %341 = vmatpush1.msra.mxu0 0.0
  %342 = vmatprep.subr.mxu0 0.0
  %343 = vmatpush1.msra.mxu0 0.0
  %344 = vmatprep.subr.mxu0 0.0
  %345 = vmatpush1.msra.mxu0 0.0
  %346 = vmatprep.subr.mxu0 0.0
  %347 = vmatpush1.msra.mxu0 0.0
  %348 = vmatprep.subr.mxu0 0.0
  %349 = vmatpush1.msra.mxu0 0.0
  %350 = vmatprep.subr.mxu0 0.0
  %351 = vmatpush1.msra.mxu0 0.0
  %352 = vmatprep.subr.mxu0 0.0
  %353 = vmatpush1.msra.mxu0 0.0
  %354 = vmatprep.subr.mxu0 0.0
  %355 = vmatpush1.msra.mxu0 0.0
  %356 = vmatprep.subr.mxu0 0.0
  %357 = vmatpush1.msra.mxu0 0.0
  %358 = vmatprep.subr.mxu0 0.0
  %359 = vmatpush1.msra.mxu0 0.0
  %360 = vmatprep.subr.mxu0 0.0
  %361 = vmatpush1.msra.mxu0 0.0
  %362 = vmatprep.subr.mxu0 0.0
  %363 = vmatpush1.msra.mxu0 0.0
  %364 = vmatprep.subr.mxu0 0.0
  %365 = vmatpush1.msra.mxu0 0.0
  %366 = vmatprep.subr.mxu0 0.0
  %367 = vmatpush1.msra.mxu0 0.0
  %368 = vmatprep.subr.mxu0 0.0
  %369 = vmatpush1.msra.mxu0 0.0
  %370 = vmatprep.subr.mxu0 0.0
  %371 = vmatpush1.msra.mxu0 0.0
  %372 = vmatprep.mubr.f32.mxu0 0.0
  %373 = vmatmul.mubr.f32.gmra.mrb[0].mxu0 %v222
  %v374 = vpop.f32.mrb[0].mxu0
  %v375 = vadd.f32 %v307, %v374
  %v376 = vpop.f32.mrb[0].mxu0
  %377 = vmatprep.mubr.f32.mxu0 0.0
  %378 = vmatmul.mubr.f32.gmra.mrb[0].mxu0 %v225
  %v379 = vpop.f32.mrb[0].mxu0
  %v380 = vadd.f32 %v307, %v379
  %v381 = vpop.f32.mrb[0].mxu0
  %382 = vdwg.mxu0
  %383 = vst.msk [vmem:[%s7] sm:$0xff] %vm49, %v375
  %384 = vst.msk [vmem:[%s7 + $0x8] sm:$0xff] %vm49, %v380
  // Predicated region
  $region22: #{cross_transformer_forward.4} parent=0 // pred_check
    _
  $region23: #{cross_transformer_forward.4} parent=0 // pred_check_branch
    %386 = sbr.rel (0) target = $region25
  $region24: #{cross_transformer_forward.4} parent=0 // pred_region
    _
  $region25: #{cross_transformer_forward.4} parent=0 // pred_fallthru
    _
  // Predicated region
  $region26: #{cross_transformer_forward.4} parent=0 // pred_check
    _
  $region27: #{cross_transformer_forward.4} parent=0 // pred_check_branch
    %388 = sbr.rel (0) target = $region29
  $region28: #{cross_transformer_forward.4} parent=0 // pred_region
    _
  $region29: #{cross_transformer_forward.4} parent=0 // pred_fallthru
    _
  // Predicated region
  $region30: #{cross_transformer_forward.4} parent=0 // pred_check
    _
  $region31: #{cross_transformer_forward.4} parent=0 // pred_check_branch
    %390 = sbr.rel (0) target = $region33
  $region32: #{cross_transformer_forward.4} parent=0 // pred_region
    _
  $region33: #{cross_transformer_forward.4} parent=0 // pred_fallthru
    _
  // Predicated region
  $region34: #{cross_transformer_forward.4} parent=0 // pred_check
    _
  $region35: #{cross_transformer_forward.4} parent=0 // pred_check_branch
    %392 = sbr.rel (0) target = $region37
  $region36: #{cross_transformer_forward.4} parent=0 // pred_region
    _
  $region37: #{cross_transformer_forward.4} parent=0 // pred_fallthru
    _
  // Predicated region
  $region38: #{cross_transformer_forward.4} parent=0 // pred_check
    _
  $region39: #{cross_transformer_forward.4} parent=0 // pred_check_branch
    %394 = sbr.rel (0) target = $region41
  $region40: #{cross_transformer_forward.4} parent=0 // pred_region
    _
  $region41: #{cross_transformer_forward.4} parent=0 // pred_fallthru
    _
  // Predicated region
  $region42: #{cross_transformer_forward.4} parent=0 // pred_check
    _
  $region43: #{cross_transformer_forward.4} parent=0 // pred_check_branch
    %396 = sbr.rel (0) target = $region45
  $region44: #{cross_transformer_forward.4} parent=0 // pred_region
    _
  $region45: #{cross_transformer_forward.4} parent=0 // pred_fallthru
    _

// kernel: cross_transformer_forward.6
$region0: #{cross_transformer_forward.6}
  #allocation0 [shape = 'u32[]', space=smem, size = 0x4, offset = 0x4, fixed_abs, tag = 'smem constant byte address 0x4 - core index']
  #allocation1 [shape = 'u32[144,128]{1,0:T(1,128)}', space=vmem, size = 0x12000, scoped, tag = 'internal scratch']
  %s0 = inlined_call_operand.vmem [shape: f32[2,16,32], index: 0, kind: input, shape index: {}]
  %s1 = inlined_call_operand.vmem [shape: f32[2,16,32], index: 1, kind: input, shape index: {}]
  %s2 = inlined_call_operand.vmem [shape: f32[32,32], index: 2, kind: input, shape index: {}]
  %s3 = inlined_call_operand.vmem [shape: f32[1,32], index: 3, kind: input, shape index: {}]
  %s4 = inlined_call_operand.vmem [shape: f32[1,32], index: 4, kind: input, shape index: {}]
  %s5 = inlined_call_operand.vmem [shape: f32[1,32], index: 5, kind: input, shape index: {}]
  %s6 = inlined_call_operand.vmem [shape: f32[2,16,32], index: 6, kind: output, shape index: {}]
  %s7 = sld [smem:[#allocation0]]
  $region57: #{cross_transformer_forward.6} parent=0
    _
  %s9 = ssub.s32 1, %s7
  %s10 = scalar_select 0, %s9, %s7
  loop: start=0, step=1, limit=4
  $region2: #{cross_transformer_forward.6} parent=0 // loop_pre_header
    _
  $region3: #{cross_transformer_forward.6} parent=0 // loop_header
    %s12 = sphi 0, %s16
    %p13 = scmp.ge.s32.totalorder %s12, 4
    %s19 = sphi 0, %s31
    %s20 = sphi 0, %s27
    %s21 = sphi 0, %s19
    %s22 = sphi 0, %s20
    %s23 = sphi 0, %s21
    %s24 = sphi 0, %s22
    %s36 = sphi 0, %s38
    %s39 = sphi 0, %s36
    %s40 = sphi 0, %s39
    %s56 = sphi 0, %s40
    %s64 = sphi 0, %s66
    %s67 = sphi 0, %s64
    %s68 = sphi 0, %s67
    %s84 = sphi 0, %s68
    %s88 = sphi 0, %s88
    %s90 = sphi 0, %s88
    %s91 = sphi 0, %s90
    %s105 = sphi 0, %s91
    %s109 = sphi 0, %s109
    %s111 = sphi 0, %s109
    %s112 = sphi 0, %s111
    %s126 = sphi 0, %s112
    %s130 = sphi 0, %s130
    %s132 = sphi 0, %s130
    %s133 = sphi 0, %s132
    %s147 = sphi 0, %s133
    %s151 = sphi 0, %s151
    %s153 = sphi 0, %s151
    %s154 = sphi 0, %s153
    %s168 = sphi 0, %s154
    %s176 = sphi 0, %s178
    %s179 = sphi 0, %s176
    %s180 = sphi 0, %s179
    %s196 = sphi 0, %s180
  $region4: #{cross_transformer_forward.6} parent=0 // loop_header_branch
    %15 = sbr.rel (%p13) target = $region8
  $region5: #{cross_transformer_forward.6} parent=0 // loop_body
    %s17 = ssub.s32 %s12, 1
    %s18 = ssub.s32 %s12, 2
    %s25 = sadd.s32 1, %s20
    %p26 = scmp.ge.s32.totalorder %s25, 1
    %s27 = scalar_select %p26, 0, %s25
    %s28 = sadd.s32 1, %s19
    %s29 = scalar_select %p26, %s28, %s19
    %p30 = scmp.ge.s32.totalorder %s29, 2
    %s31 = scalar_select %p30, 0, %s29
    %s32 = ssub.s32 %s19, %s31
    %s33 = ssub.s32 %s20, %s27
    %s34 = sor.u32 %s32, %s33
    %p35 = scmp.eq.s32.totalorder %s34, 0
    %s37 = sadd.s32 %s36, 1
    %s38 = scalar_select %p35, %s36, %s37
    %p41 = pneg %p35
    %p42 = scmp.eq.s32.totalorder %s12, 1
    %p43 = por %p41, %p42
    %p44 = scmp.ne.s32.totalorder %s36, %s39
    %p45 = scmp.eq.s32.totalorder %s12, 0
    %p46 = por %p44, %p45
    %p47 = scmp.ne.s32.totalorder %s36, %s39
    %p48 = scmp.eq.s32.totalorder %s17, 1
    %p49 = por %p47, %p48
    %p50 = scmp.ne.s32.totalorder %s39, %s40
    %p51 = scmp.eq.s32.totalorder %s17, 0
    %p52 = por %p50, %p51
    %p53 = scmp.ne.s32.totalorder %s39, %s40
    %p54 = scmp.eq.s32.totalorder %s18, 1
    %p55 = por %p53, %p54
    %p57 = scmp.ne.s32.totalorder %s40, %s56
    %p58 = scmp.eq.s32.totalorder %s18, 0
    %p59 = por %p57, %p58
    %s60 = ssub.s32 %s19, %s31
    %s61 = ssub.s32 %s20, %s27
    %s62 = sor.u32 %s60, %s61
    %p63 = scmp.eq.s32.totalorder %s62, 0
    %s65 = sadd.s32 %s64, 1
    %s66 = scalar_select %p63, %s64, %s65
    %p69 = pneg %p63
    %p70 = scmp.eq.s32.totalorder %s12, 1
    %p71 = por %p69, %p70
    %p72 = scmp.ne.s32.totalorder %s64, %s67
    %p73 = scmp.eq.s32.totalorder %s12, 0
    %p74 = por %p72, %p73
    %p75 = scmp.ne.s32.totalorder %s64, %s67
    %p76 = scmp.eq.s32.totalorder %s17, 1
    %p77 = por %p75, %p76
    %p78 = scmp.ne.s32.totalorder %s67, %s68
    %p79 = scmp.eq.s32.totalorder %s17, 0
    %p80 = por %p78, %p79
    %p81 = scmp.ne.s32.totalorder %s67, %s68
    %p82 = scmp.eq.s32.totalorder %s18, 1
    %p83 = por %p81, %p82
    %p85 = scmp.ne.s32.totalorder %s68, %s84
    %p86 = scmp.eq.s32.totalorder %s18, 0
    %p87 = por %p85, %p86
    %s89 = sadd.s32 %s88, 1
    %p92 = scmp.eq.s32.totalorder %s12, 1
    %p93 = scmp.ne.s32.totalorder %s88, %s90
    %p94 = scmp.eq.s32.totalorder %s12, 0
    %p95 = por %p93, %p94
    %p96 = scmp.ne.s32.totalorder %s88, %s90
    %p97 = scmp.eq.s32.totalorder %s17, 1
    %p98 = por %p96, %p97
    %p99 = scmp.ne.s32.totalorder %s90, %s91
    %p100 = scmp.eq.s32.totalorder %s17, 0
    %p101 = por %p99, %p100
    %p102 = scmp.ne.s32.totalorder %s90, %s91
    %p103 = scmp.eq.s32.totalorder %s18, 1
    %p104 = por %p102, %p103
    %p106 = scmp.ne.s32.totalorder %s91, %s105
    %p107 = scmp.eq.s32.totalorder %s18, 0
    %p108 = por %p106, %p107
    %s110 = sadd.s32 %s109, 1
    %p113 = scmp.eq.s32.totalorder %s12, 1
    %p114 = scmp.ne.s32.totalorder %s109, %s111
    %p115 = scmp.eq.s32.totalorder %s12, 0
    %p116 = por %p114, %p115
    %p117 = scmp.ne.s32.totalorder %s109, %s111
    %p118 = scmp.eq.s32.totalorder %s17, 1
    %p119 = por %p117, %p118
    %p120 = scmp.ne.s32.totalorder %s111, %s112
    %p121 = scmp.eq.s32.totalorder %s17, 0
    %p122 = por %p120, %p121
    %p123 = scmp.ne.s32.totalorder %s111, %s112
    %p124 = scmp.eq.s32.totalorder %s18, 1
    %p125 = por %p123, %p124
    %p127 = scmp.ne.s32.totalorder %s112, %s126
    %p128 = scmp.eq.s32.totalorder %s18, 0
    %p129 = por %p127, %p128
    %s131 = sadd.s32 %s130, 1
    %p134 = scmp.eq.s32.totalorder %s12, 1
    %p135 = scmp.ne.s32.totalorder %s130, %s132
    %p136 = scmp.eq.s32.totalorder %s12, 0
    %p137 = por %p135, %p136
    %p138 = scmp.ne.s32.totalorder %s130, %s132
    %p139 = scmp.eq.s32.totalorder %s17, 1
    %p140 = por %p138, %p139
    %p141 = scmp.ne.s32.totalorder %s132, %s133
    %p142 = scmp.eq.s32.totalorder %s17, 0
    %p143 = por %p141, %p142
    %p144 = scmp.ne.s32.totalorder %s132, %s133
    %p145 = scmp.eq.s32.totalorder %s18, 1
    %p146 = por %p144, %p145
    %p148 = scmp.ne.s32.totalorder %s133, %s147
    %p149 = scmp.eq.s32.totalorder %s18, 0
    %p150 = por %p148, %p149
    %s152 = sadd.s32 %s151, 1
    %p155 = scmp.eq.s32.totalorder %s12, 1
    %p156 = scmp.ne.s32.totalorder %s151, %s153
    %p157 = scmp.eq.s32.totalorder %s12, 0
    %p158 = por %p156, %p157
    %p159 = scmp.ne.s32.totalorder %s151, %s153
    %p160 = scmp.eq.s32.totalorder %s17, 1
    %p161 = por %p159, %p160
    %p162 = scmp.ne.s32.totalorder %s153, %s154
    %p163 = scmp.eq.s32.totalorder %s17, 0
    %p164 = por %p162, %p163
    %p165 = scmp.ne.s32.totalorder %s153, %s154
    %p166 = scmp.eq.s32.totalorder %s18, 1
    %p167 = por %p165, %p166
    %p169 = scmp.ne.s32.totalorder %s154, %s168
    %p170 = scmp.eq.s32.totalorder %s18, 0
    %p171 = por %p169, %p170
    %s172 = ssub.s32 %s19, %s31
    %s173 = ssub.s32 %s20, %s27
    %s174 = sor.u32 %s172, %s173
    %p175 = scmp.eq.s32.totalorder %s174, 0
    %s177 = sadd.s32 %s176, 1
    %s178 = scalar_select %p175, %s176, %s177
    %p181 = pneg %p175
    %p182 = scmp.eq.s32.totalorder %s12, 1
    %p183 = por %p181, %p182
    %p184 = scmp.ne.s32.totalorder %s176, %s179
    %p185 = scmp.eq.s32.totalorder %s12, 0
    %p186 = por %p184, %p185
    %p187 = scmp.ne.s32.totalorder %s176, %s179
    %p188 = scmp.eq.s32.totalorder %s17, 1
    %p189 = por %p187, %p188
    %p190 = scmp.ne.s32.totalorder %s179, %s180
    %p191 = scmp.eq.s32.totalorder %s17, 0
    %p192 = por %p190, %p191
    %p193 = scmp.ne.s32.totalorder %s179, %s180
    %p194 = scmp.eq.s32.totalorder %s18, 1
    %p195 = por %p193, %p194
    %p197 = scmp.ne.s32.totalorder %s180, %s196
    %p198 = scmp.eq.s32.totalorder %s18, 0
    %p199 = por %p197, %p198
    %p200 = scmp.le.s32.totalorder 1, %s12
    %p201 = scmp.lt.s32.totalorder %s12, 3
    %p202 = pnand %p200, %p201
    %p203 = pneg %p202
    // Predicated region
    $region9: #{cross_transformer_forward.6} parent=5 // pred_check
      _
    $region10: #{cross_transformer_forward.6} parent=5 // pred_check_branch
      %205 = sbr.rel (%p202) target = $region12
    $region11: #{cross_transformer_forward.6} parent=5 // pred_region
      %s206 = ssub.s32 %s12, 1
      // Predicated region
      $region13: #{cross_transformer_forward.6} parent=11 // pred_check
        %p207 = pneg %p101
      $region14: #{cross_transformer_forward.6} parent=11 // pred_check_branch
        %209 = sbr.rel (%p207) target = $region16
      $region15: #{cross_transformer_forward.6} parent=11 // pred_region
        _
      $region16: #{cross_transformer_forward.6} parent=11 // pred_fallthru
        _
      // Predicated region
      $region17: #{cross_transformer_forward.6} parent=11 // pred_check
        %p210 = pneg %p122
      $region18: #{cross_transformer_forward.6} parent=11 // pred_check_branch
        %212 = sbr.rel (%p210) target = $region20
      $region19: #{cross_transformer_forward.6} parent=11 // pred_region
        _
      $region20: #{cross_transformer_forward.6} parent=11 // pred_fallthru
        _
      // Predicated region
      $region21: #{cross_transformer_forward.6} parent=11 // pred_check
        %p213 = pneg %p143
      $region22: #{cross_transformer_forward.6} parent=11 // pred_check_branch
        %215 = sbr.rel (%p213) target = $region24
      $region23: #{cross_transformer_forward.6} parent=11 // pred_region
        _
      $region24: #{cross_transformer_forward.6} parent=11 // pred_fallthru
        _
      // Predicated region
      $region25: #{cross_transformer_forward.6} parent=11 // pred_check
        %p216 = pneg %p164
      $region26: #{cross_transformer_forward.6} parent=11 // pred_check_branch
        %218 = sbr.rel (%p216) target = $region28
      $region27: #{cross_transformer_forward.6} parent=11 // pred_region
        _
      $region28: #{cross_transformer_forward.6} parent=11 // pred_fallthru
        _
    $region12: #{cross_transformer_forward.6} parent=5 // pred_fallthru
      _
    %p219 = scmp.lt.s32.totalorder %s12, 2
    // Predicated region
    $region29: #{cross_transformer_forward.6} parent=5 // pred_check
      %p220 = pneg %p219
    $region30: #{cross_transformer_forward.6} parent=5 // pred_check_branch
      %222 = sbr.rel (%p220) target = $region32
    $region31: #{cross_transformer_forward.6} parent=5 // pred_region
      // Predicated region
      $region33: #{cross_transformer_forward.6} parent=31 // pred_check
        %p223 = pneg %p46
      $region34: #{cross_transformer_forward.6} parent=31 // pred_check_branch
        %225 = sbr.rel (%p223) target = $region36
      $region35: #{cross_transformer_forward.6} parent=31 // pred_region
        %s226 = smul.u32 2, %s20
        %p227 = scmp.lt.s32.totalorder %s19, 1
        %s228 = scalar_select %p227, %s19, 1
        %p229 = scmp.lt.s32.totalorder %s226, 1
        %s230 = scalar_select %p229, %s226, 1
        %s231 = smul.addr %s228, 2
        %s232 = sadd.s32 %s230, %s231
        %s233 = smul.addr %s232, 8
        %s234 = scalar_lea.vmem %s0, %s233
        %s235 = smul.u32 2, %s20
      $region36: #{cross_transformer_forward.6} parent=31 // pred_fallthru
        _
      // Predicated region
      $region37: #{cross_transformer_forward.6} parent=31 // pred_check
        %p236 = pneg %p74
      $region38: #{cross_transformer_forward.6} parent=31 // pred_check_branch
        %238 = sbr.rel (%p236) target = $region40
      $region39: #{cross_transformer_forward.6} parent=31 // pred_region
        %s239 = smul.u32 2, %s20
        %p240 = scmp.lt.s32.totalorder %s19, 1
        %s241 = scalar_select %p240, %s19, 1
        %p242 = scmp.lt.s32.totalorder %s239, 1
        %s243 = scalar_select %p242, %s239, 1
        %s244 = smul.addr %s241, 2
        %s245 = sadd.s32 %s243, %s244
        %s246 = smul.addr %s245, 8
        %s247 = scalar_lea.vmem %s1, %s246
        %s248 = smul.u32 2, %s20
      $region40: #{cross_transformer_forward.6} parent=31 // pred_fallthru
        _
    $region32: #{cross_transformer_forward.6} parent=5 // pred_fallthru
      _
    %p249 = scmp.le.s32.totalorder 1, %s12
    %p250 = scmp.lt.s32.totalorder %s12, 3
    %p251 = pnand %p249, %p250
    %p252 = pneg %p251
    // Predicated region
    $region41: #{cross_transformer_forward.6} parent=5 // pred_check
      _
    $region42: #{cross_transformer_forward.6} parent=5 // pred_check_branch
      %254 = sbr.rel (%p251) target = $region44
    $region43: #{cross_transformer_forward.6} parent=5 // pred_region
      %s255 = ssub.s32 %s12, 1
      %s256 = smul.u32 2, %s22
      %p257 = scmp.lt.s32.totalorder %s21, 1
      %s258 = scalar_select %p257, %s21, 1
      %p259 = scmp.lt.s32.totalorder %s256, 1
      %s260 = scalar_select %p259, %s256, 1
      %s261 = smul.addr %s258, 2
      %s262 = sadd.s32 %s260, %s261
      %s263 = smul.addr %s262, 8
      %s264 = scalar_lea.vmem %s0, %s263
      %p265 = pneg %p52
      %p266 = pneg %p49
      %s267 = smul.u32 2, %s22
      %p268 = scmp.lt.s32.totalorder %s21, 1
      %s269 = scalar_select %p268, %s21, 1
      %p270 = scmp.lt.s32.totalorder %s267, 1
      %s271 = scalar_select %p270, %s267, 1
      %s272 = smul.addr %s269, 2
      %s273 = sadd.s32 %s271, %s272
      %s274 = smul.addr %s273, 8
      %s275 = scalar_lea.vmem %s1, %s274
      %p276 = pneg %p80
      %p277 = pneg %p77
      %p278 = pneg %p101
      %p279 = pneg %p98
      %p280 = pneg %p122
      %p281 = pneg %p119
      %p282 = pneg %p143
      %p283 = pneg %p140
      %p284 = pneg %p164
      %p285 = pneg %p161
      %p286 = pneg %p192
      %p287 = pneg %p189
      %s288 = smul.u32 2, %s22
      %p289 = scmp.lt.s32.totalorder %s21, 1
      %s290 = scalar_select %p289, %s21, 1
      %p291 = scmp.lt.s32.totalorder %s288, 1
      %s292 = scalar_select %p291, %s288, 1
      %s293 = smul.addr %s290, 2
      %s294 = sadd.s32 %s292, %s293
      %s295 = smul.addr %s294, 8
      %s296 = scalar_lea.vmem %s6, %s295
      %s297 = smul.u32 2, %s22
      %p298 = scmp.lt.s32.totalorder %s21, 1
      %s299 = scalar_select %p298, %s21, 1
      %p300 = scmp.lt.s32.totalorder %s297, 1
      %s301 = scalar_select %p300, %s297, 1
      %s302 = smul.addr %s299, 2
      %s303 = sadd.s32 %s301, %s302
      %s304 = smul.addr %s303, 8
      %s305 = scalar_lea.vmem %s0, %s304
      %s306 = smul.u32 2, %s22
      %s307 = smul.u32 2, %s22
      %p308 = scmp.lt.s32.totalorder %s21, 1
      %s309 = scalar_select %p308, %s21, 1
      %p310 = scmp.lt.s32.totalorder %s307, 1
      %s311 = scalar_select %p310, %s307, 1
      %s312 = smul.addr %s309, 2
      %s313 = sadd.s32 %s311, %s312
      %s314 = smul.addr %s313, 8
      %s315 = scalar_lea.vmem %s1, %s314
      %s316 = smul.u32 2, %s22
      %s317 = smul.u32 2, %s22
      %p318 = scmp.lt.s32.totalorder %s21, 1
      %s319 = scalar_select %p318, %s21, 1
      %p320 = scmp.lt.s32.totalorder %s317, 1
      %s321 = scalar_select %p320, %s317, 1
      %s322 = smul.addr %s319, 2
      %s323 = sadd.s32 %s321, %s322
      %s324 = smul.addr %s323, 8
      %s325 = scalar_lea.vmem %s6, %s324
      %s326 = smul.u32 2, %s22
      %v327 = vld [vmem:[%s305] sm:$0xff]
      %v328 = vld [vmem:[%s305 + $0x8] sm:$0xff]
      %v329 = vld [vmem:[%s315] sm:$0xff]
      %v330 = vld [vmem:[%s315 + $0x8] sm:$0xff]
      %v331 = vld [vmem:[%s2] sm:$0xff]
      %v332 = vld [vmem:[%s2 + $0x8] sm:$0xff]
      %v333 = vld [vmem:[%s2 + $0x10] sm:$0xff]
      %v334 = vld [vmem:[%s2 + $0x18] sm:$0xff]
      %v335 = vld [vmem:[%s3] sm:$0x1]
      %v337 = vlaneseq
      %v338 = vshrl.u32 %v337, 7
      %v339 = vsub.s32 0, %v338
      %v340 = vrot.slane %v335, %v339
      %vm342 = vcmask 261120
      %v344 = vsel %vm342, %v327, 0
      %v347 = vsel %vm342, %v328, 0
      %349 = vmatprep.subr.mxu0 0.0
      %350 = vmatpush1.msra.mxu0 %v331
      %351 = vmatprep.subr.mxu0 0.0
      %352 = vmatpush1.msra.mxu0 %v332
      %353 = vmatprep.subr.mxu0 0.0
      %354 = vmatpush1.msra.mxu0 %v333
      %355 = vmatprep.subr.mxu0 0.0
      %356 = vmatpush1.msra.mxu0 %v334
      %357 = vmatprep.subr.mxu0 0.0
      %358 = vmatpush1.msra.mxu0 0.0
      %359 = vmatprep.subr.mxu0 0.0
      %360 = vmatpush1.msra.mxu0 0.0
      %361 = vmatprep.subr.mxu0 0.0
      %362 = vmatpush1.msra.mxu0 0.0
      %363 = vmatprep.subr.mxu0 0.0
      %364 = vmatpush1.msra.mxu0 0.0
      %365 = vmatprep.subr.mxu0 0.0
      %366 = vmatpush1.msra.mxu0 0.0
      %367 = vmatprep.subr.mxu0 0.0
      %368 = vmatpush1.msra.mxu0 0.0
      %369 = vmatprep.subr.mxu0 0.0
      %370 = vmatpush1.msra.mxu0 0.0
      %371 = vmatprep.subr.mxu0 0.0
      %372 = vmatpush1.msra.mxu0 0.0
      %373 = vmatprep.subr.mxu0 0.0
      %374 = vmatpush1.msra.mxu0 0.0
      %375 = vmatprep.subr.mxu0 0.0
      %376 = vmatpush1.msra.mxu0 0.0
      %377 = vmatprep.subr.mxu0 0.0
      %378 = vmatpush1.msra.mxu0 0.0
      %379 = vmatprep.subr.mxu0 0.0
      %380 = vmatpush1.msra.mxu0 0.0
      %381 = vmatprep.subr.mxu0 0.0
      %382 = vmatpush1.msra.mxu0 0.0
      %383 = vmatprep.subr.mxu0 0.0
      %384 = vmatpush1.msra.mxu0 0.0
      %385 = vmatprep.subr.mxu0 0.0
      %386 = vmatpush1.msra.mxu0 0.0
      %387 = vmatprep.subr.mxu0 0.0
      %388 = vmatpush1.msra.mxu0 0.0
      %389 = vmatprep.subr.mxu0 0.0
      %390 = vmatpush1.msra.mxu0 0.0
      %391 = vmatprep.subr.mxu0 0.0
      %392 = vmatpush1.msra.mxu0 0.0
      %393 = vmatprep.subr.mxu0 0.0
      %394 = vmatpush1.msra.mxu0 0.0
      %395 = vmatprep.subr.mxu0 0.0
      %396 = vmatpush1.msra.mxu0 0.0
      %397 = vmatprep.subr.mxu0 0.0
      %398 = vmatpush1.msra.mxu0 0.0
      %399 = vmatprep.subr.mxu0 0.0
      %400 = vmatpush1.msra.mxu0 0.0
      %401 = vmatprep.subr.mxu0 0.0
      %402 = vmatpush1.msra.mxu0 0.0
      %403 = vmatprep.subr.mxu0 0.0
      %404 = vmatpush1.msra.mxu0 0.0
      %405 = vmatprep.subr.mxu0 0.0
      %406 = vmatpush1.msra.mxu0 0.0
      %407 = vmatprep.subr.mxu0 0.0
      %408 = vmatpush1.msra.mxu0 0.0
      %409 = vmatprep.subr.mxu0 0.0
      %410 = vmatpush1.msra.mxu0 0.0
      %411 = vmatprep.subr.mxu0 0.0
      %412 = vmatpush1.msra.mxu0 0.0
      %413 = vmatprep.mubr.f32.mxu0 0.0
      %414 = vmatmul.mubr.f32.gmra.mrb[0].mxu0 %v344
      %v415 = vpop.f32.mrb[0].mxu0
      %v416 = vadd.f32 %v340, %v415
      %v417 = vpop.f32.mrb[0].mxu0
      %418 = vmatprep.mubr.f32.mxu0 0.0
      %419 = vmatmul.mubr.f32.gmra.mrb[0].mxu0 %v347
      %v420 = vpop.f32.mrb[0].mxu0
      %v421 = vadd.f32 %v340, %v420
      %v422 = vpop.f32.mrb[0].mxu0
      %423 = vdwg.mxu0
      %v424 = vadd.f32 %v329, %v416
      %v425 = vadd.f32 %v330, %v421
      %v426 = vsel %vm342, %v424, 0.0
      %427 = vadd.xlane.f32.xlu0 %v426
      %v428 = vpop.xlane.xlu0 %427
      %v429 = vsel %vm342, %v425, 0.0
      %430 = vadd.xlane.f32.xlu0 %v429
      %v431 = vpop.xlane.xlu0 %430
      %v432 = vrcp.pop 32.0
      %v433 = vmul.f32 %v428, %v432
      %v434 = vmul.f32 %v431, %v432
      %v435 = vsub.f32 %v424, %v433
      %v436 = vsub.f32 %v425, %v434
      %v437 = vmul.f32 %v435, %v435
      %v438 = vmul.f32 %v436, %v436
      %v439 = vsel %vm342, %v437, 0.0
      %440 = vadd.xlane.f32.xlu0 %v439
      %v441 = vpop.xlane.xlu0 %440
      %v442 = vsel %vm342, %v438, 0.0
      %443 = vadd.xlane.f32.xlu0 %v442
      %v444 = vpop.xlane.xlu0 %443
      %v445 = vmul.f32 %v441, %v432
      %v446 = vmul.f32 %v444, %v432
      %v447 = vadd.f32 %v445, 1e-05
      %v448 = vadd.f32 %v446, 1e-05
      %v449 = vrsqrt.pop %v447
      %v450 = vrsqrt.pop %v448
      %v451 = vmul.f32 %v435, %v449
      %v452 = vmul.f32 %v436, %v450
      %v453 = vld [vmem:[%s4] sm:$0x1]
      %v455 = vlaneseq
      %v456 = vshrl.u32 %v455, 7
      %v457 = vsub.s32 0, %v456
      %v458 = vrot.slane %v453, %v457
      %v460 = vmul.f32 %v451, %v458
      %v461 = vmul.f32 %v452, %v458
      %v462 = vld [vmem:[%s5] sm:$0x1]
      %v464 = vlaneseq
      %v465 = vshrl.u32 %v464, 7
      %v466 = vsub.s32 0, %v465
      %v467 = vrot.slane %v462, %v466
      %v469 = vadd.f32 %v460, %v467
      %v470 = vadd.f32 %v461, %v467
      %471 = vst.msk [vmem:[%s325] sm:$0xff] %vm342, %v469
      %472 = vst.msk [vmem:[%s325 + $0x8] sm:$0xff] %vm342, %v470
      %s473 = smul.u32 2, %s22
      %p474 = scmp.lt.s32.totalorder %s21, 1
      %s475 = scalar_select %p474, %s21, 1
      %p476 = scmp.lt.s32.totalorder %s473, 1
      %s477 = scalar_select %p476, %s473, 1
      %s478 = smul.addr %s475, 2
      %s479 = sadd.s32 %s477, %s478
      %s480 = smul.addr %s479, 8
      %s481 = scalar_lea.vmem %s6, %s480
      // Predicated region
      $region45: #{cross_transformer_forward.6} parent=43 // pred_check
        %p482 = pneg %p189
      $region46: #{cross_transformer_forward.6} parent=43 // pred_check_branch
        %484 = sbr.rel (%p482) target = $region48
      $region47: #{cross_transformer_forward.6} parent=43 // pred_region
        %s485 = smul.u32 2, %s22
      $region48: #{cross_transformer_forward.6} parent=43 // pred_fallthru
        _
    $region44: #{cross_transformer_forward.6} parent=5 // pred_fallthru
      _
    %p486 = scmp.le.s32.totalorder 2, %s12
    // Predicated region
    $region49: #{cross_transformer_forward.6} parent=5 // pred_check
      %p487 = pneg %p486
    $region50: #{cross_transformer_forward.6} parent=5 // pred_check_branch
      %489 = sbr.rel (%p487) target = $region52
    $region51: #{cross_transformer_forward.6} parent=5 // pred_region
      %s490 = ssub.s32 %s12, 2
      // Predicated region
      $region53: #{cross_transformer_forward.6} parent=51 // pred_check
        %p491 = pneg %p195
      $region54: #{cross_transformer_forward.6} parent=51 // pred_check_branch
        %493 = sbr.rel (%p491) target = $region56
      $region55: #{cross_transformer_forward.6} parent=51 // pred_region
        %s494 = smul.u32 2, %s24
        %p495 = scmp.lt.s32.totalorder %s23, 1
        %s496 = scalar_select %p495, %s23, 1
        %p497 = scmp.lt.s32.totalorder %s494, 1
        %s498 = scalar_select %p497, %s494, 1
        %s499 = smul.addr %s496, 2
        %s500 = sadd.s32 %s498, %s499
        %s501 = smul.addr %s500, 8
        %s502 = scalar_lea.vmem %s6, %s501
      $region56: #{cross_transformer_forward.6} parent=51 // pred_fallthru
        _
    $region52: #{cross_transformer_forward.6} parent=5 // pred_fallthru
      _
  $region6: #{cross_transformer_forward.6} parent=0 // loop_footer
    %s16 = sadd.s32 1, %s12
  $region7: #{cross_transformer_forward.6} parent=0 // loop_footer_branch
    %11 = sbr.rel target = $region3
  $region8: #{cross_transformer_forward.6} parent=0 // loop_exit
    _

// kernel: cross_transformer_forward.7
$region0: #{cross_transformer_forward.7}
  #allocation0 [shape = 'u32[]', space=smem, size = 0x4, offset = 0x4, fixed_abs, tag = 'smem constant byte address 0x4 - core index']
  #allocation1 [shape = 'u32[144,128]{1,0:T(1,128)}', space=vmem, size = 0x12000, scoped, tag = 'internal scratch']
  %s0 = inlined_call_operand.vmem [shape: f32[2,16,32], index: 0, kind: input, shape index: {}, may-alias: {0,7}]
  %s1 = inlined_call_operand.vmem [shape: f32[32,128], index: 1, kind: input, shape index: {}]
  %s2 = inlined_call_operand.vmem [shape: f32[1,128], index: 2, kind: input, shape index: {}]
  %s3 = inlined_call_operand.vmem [shape: f32[128,32], index: 3, kind: input, shape index: {}]
  %s4 = inlined_call_operand.vmem [shape: f32[1,32], index: 4, kind: input, shape index: {}]
  %s5 = inlined_call_operand.vmem [shape: f32[1,32], index: 5, kind: input, shape index: {}]
  %s6 = inlined_call_operand.vmem [shape: f32[1,32], index: 6, kind: input, shape index: {}]
  %s7 = inlined_call_operand.vmem [shape: f32[2,16,32], index: 7, kind: output, shape index: {}, may-alias: {0,7}]
  %s8 = sld [smem:[#allocation0]]
  $region61: #{cross_transformer_forward.7} parent=0
    _
  %s10 = ssub.s32 1, %s8
  %s11 = scalar_select 0, %s10, %s8
  loop: start=0, step=1, limit=4
  $region2: #{cross_transformer_forward.7} parent=0 // loop_pre_header
    _
  $region3: #{cross_transformer_forward.7} parent=0 // loop_header
    %s13 = sphi 0, %s17
    %p14 = scmp.ge.s32.totalorder %s13, 4
    %s20 = sphi 0, %s32
    %s21 = sphi 0, %s28
    %s22 = sphi 0, %s20
    %s23 = sphi 0, %s21
    %s24 = sphi 0, %s22
    %s25 = sphi 0, %s23
    %s37 = sphi 0, %s39
    %s40 = sphi 0, %s37
    %s41 = sphi 0, %s40
    %s57 = sphi 0, %s41
    %s61 = sphi 0, %s61
    %s63 = sphi 0, %s61
    %s64 = sphi 0, %s63
    %s78 = sphi 0, %s64
    %s82 = sphi 0, %s82
    %s84 = sphi 0, %s82
    %s85 = sphi 0, %s84
    %s99 = sphi 0, %s85
    %s103 = sphi 0, %s103
    %s105 = sphi 0, %s103
    %s106 = sphi 0, %s105
    %s120 = sphi 0, %s106
    %s124 = sphi 0, %s124
    %s126 = sphi 0, %s124
    %s127 = sphi 0, %s126
    %s141 = sphi 0, %s127
    %s145 = sphi 0, %s145
    %s147 = sphi 0, %s145
    %s148 = sphi 0, %s147
    %s162 = sphi 0, %s148
    %s166 = sphi 0, %s166
    %s168 = sphi 0, %s166
    %s169 = sphi 0, %s168
    %s183 = sphi 0, %s169
    %s191 = sphi 0, %s193
    %s194 = sphi 0, %s191
    %s195 = sphi 0, %s194
    %s211 = sphi 0, %s195
  $region4: #{cross_transformer_forward.7} parent=0 // loop_header_branch
    %16 = sbr.rel (%p14) target = $region8
  $region5: #{cross_transformer_forward.7} parent=0 // loop_body
    %s18 = ssub.s32 %s13, 1
    %s19 = ssub.s32 %s13, 2
    %s26 = sadd.s32 1, %s21
    %p27 = scmp.ge.s32.totalorder %s26, 1
    %s28 = scalar_select %p27, 0, %s26
    %s29 = sadd.s32 1, %s20
    %s30 = scalar_select %p27, %s29, %s20
    %p31 = scmp.ge.s32.totalorder %s30, 2
    %s32 = scalar_select %p31, 0, %s30
    %s33 = ssub.s32 %s20, %s32
    %s34 = ssub.s32 %s21, %s28
    %s35 = sor.u32 %s33, %s34
    %p36 = scmp.eq.s32.totalorder %s35, 0
    %s38 = sadd.s32 %s37, 1
    %s39 = scalar_select %p36, %s37, %s38
    %p42 = pneg %p36
    %p43 = scmp.eq.s32.totalorder %s13, 1
    %p44 = por %p42, %p43
    %p45 = scmp.ne.s32.totalorder %s37, %s40
    %p46 = scmp.eq.s32.totalorder %s13, 0
    %p47 = por %p45, %p46
    %p48 = scmp.ne.s32.totalorder %s37, %s40
    %p49 = scmp.eq.s32.totalorder %s18, 1
    %p50 = por %p48, %p49
    %p51 = scmp.ne.s32.totalorder %s40, %s41
    %p52 = scmp.eq.s32.totalorder %s18, 0
    %p53 = por %p51, %p52
    %p54 = scmp.ne.s32.totalorder %s40, %s41
    %p55 = scmp.eq.s32.totalorder %s19, 1
    %p56 = por %p54, %p55
    %p58 = scmp.ne.s32.totalorder %s41, %s57
    %p59 = scmp.eq.s32.totalorder %s19, 0
    %p60 = por %p58, %p59
    %s62 = sadd.s32 %s61, 1
    %p65 = scmp.eq.s32.totalorder %s13, 1
    %p66 = scmp.ne.s32.totalorder %s61, %s63
    %p67 = scmp.eq.s32.totalorder %s13, 0
    %p68 = por %p66, %p67
    %p69 = scmp.ne.s32.totalorder %s61, %s63
    %p70 = scmp.eq.s32.totalorder %s18, 1
    %p71 = por %p69, %p70
    %p72 = scmp.ne.s32.totalorder %s63, %s64
    %p73 = scmp.eq.s32.totalorder %s18, 0
    %p74 = por %p72, %p73
    %p75 = scmp.ne.s32.totalorder %s63, %s64
    %p76 = scmp.eq.s32.totalorder %s19, 1
    %p77 = por %p75, %p76
    %p79 = scmp.ne.s32.totalorder %s64, %s78
    %p80 = scmp.eq.s32.totalorder %s19, 0
    %p81 = por %p79, %p80
    %s83 = sadd.s32 %s82, 1
    %p86 = scmp.eq.s32.totalorder %s13, 1
    %p87 = scmp.ne.s32.totalorder %s82, %s84
    %p88 = scmp.eq.s32.totalorder %s13, 0
    %p89 = por %p87, %p88
    %p90 = scmp.ne.s32.totalorder %s82, %s84
    %p91 = scmp.eq.s32.totalorder %s18, 1
    %p92 = por %p90, %p91
    %p93 = scmp.ne.s32.totalorder %s84, %s85
    %p94 = scmp.eq.s32.totalorder %s18, 0
    %p95 = por %p93, %p94
    %p96 = scmp.ne.s32.totalorder %s84, %s85
    %p97 = scmp.eq.s32.totalorder %s19, 1
    %p98 = por %p96, %p97
    %p100 = scmp.ne.s32.totalorder %s85, %s99
    %p101 = scmp.eq.s32.totalorder %s19, 0
    %p102 = por %p100, %p101
    %s104 = sadd.s32 %s103, 1
    %p107 = scmp.eq.s32.totalorder %s13, 1
    %p108 = scmp.ne.s32.totalorder %s103, %s105
    %p109 = scmp.eq.s32.totalorder %s13, 0
    %p110 = por %p108, %p109
    %p111 = scmp.ne.s32.totalorder %s103, %s105
    %p112 = scmp.eq.s32.totalorder %s18, 1
    %p113 = por %p111, %p112
    %p114 = scmp.ne.s32.totalorder %s105, %s106
    %p115 = scmp.eq.s32.totalorder %s18, 0
    %p116 = por %p114, %p115
    %p117 = scmp.ne.s32.totalorder %s105, %s106
    %p118 = scmp.eq.s32.totalorder %s19, 1
    %p119 = por %p117, %p118
    %p121 = scmp.ne.s32.totalorder %s106, %s120
    %p122 = scmp.eq.s32.totalorder %s19, 0
    %p123 = por %p121, %p122
    %s125 = sadd.s32 %s124, 1
    %p128 = scmp.eq.s32.totalorder %s13, 1
    %p129 = scmp.ne.s32.totalorder %s124, %s126
    %p130 = scmp.eq.s32.totalorder %s13, 0
    %p131 = por %p129, %p130
    %p132 = scmp.ne.s32.totalorder %s124, %s126
    %p133 = scmp.eq.s32.totalorder %s18, 1
    %p134 = por %p132, %p133
    %p135 = scmp.ne.s32.totalorder %s126, %s127
    %p136 = scmp.eq.s32.totalorder %s18, 0
    %p137 = por %p135, %p136
    %p138 = scmp.ne.s32.totalorder %s126, %s127
    %p139 = scmp.eq.s32.totalorder %s19, 1
    %p140 = por %p138, %p139
    %p142 = scmp.ne.s32.totalorder %s127, %s141
    %p143 = scmp.eq.s32.totalorder %s19, 0
    %p144 = por %p142, %p143
    %s146 = sadd.s32 %s145, 1
    %p149 = scmp.eq.s32.totalorder %s13, 1
    %p150 = scmp.ne.s32.totalorder %s145, %s147
    %p151 = scmp.eq.s32.totalorder %s13, 0
    %p152 = por %p150, %p151
    %p153 = scmp.ne.s32.totalorder %s145, %s147
    %p154 = scmp.eq.s32.totalorder %s18, 1
    %p155 = por %p153, %p154
    %p156 = scmp.ne.s32.totalorder %s147, %s148
    %p157 = scmp.eq.s32.totalorder %s18, 0
    %p158 = por %p156, %p157
    %p159 = scmp.ne.s32.totalorder %s147, %s148
    %p160 = scmp.eq.s32.totalorder %s19, 1
    %p161 = por %p159, %p160
    %p163 = scmp.ne.s32.totalorder %s148, %s162
    %p164 = scmp.eq.s32.totalorder %s19, 0
    %p165 = por %p163, %p164
    %s167 = sadd.s32 %s166, 1
    %p170 = scmp.eq.s32.totalorder %s13, 1
    %p171 = scmp.ne.s32.totalorder %s166, %s168
    %p172 = scmp.eq.s32.totalorder %s13, 0
    %p173 = por %p171, %p172
    %p174 = scmp.ne.s32.totalorder %s166, %s168
    %p175 = scmp.eq.s32.totalorder %s18, 1
    %p176 = por %p174, %p175
    %p177 = scmp.ne.s32.totalorder %s168, %s169
    %p178 = scmp.eq.s32.totalorder %s18, 0
    %p179 = por %p177, %p178
    %p180 = scmp.ne.s32.totalorder %s168, %s169
    %p181 = scmp.eq.s32.totalorder %s19, 1
    %p182 = por %p180, %p181
    %p184 = scmp.ne.s32.totalorder %s169, %s183
    %p185 = scmp.eq.s32.totalorder %s19, 0
    %p186 = por %p184, %p185
    %s187 = ssub.s32 %s20, %s32
    %s188 = ssub.s32 %s21, %s28
    %s189 = sor.u32 %s187, %s188
    %p190 = scmp.eq.s32.totalorder %s189, 0
    %s192 = sadd.s32 %s191, 1
    %s193 = scalar_select %p190, %s191, %s192
    %p196 = pneg %p190
    %p197 = scmp.eq.s32.totalorder %s13, 1
    %p198 = por %p196, %p197
    %p199 = scmp.ne.s32.totalorder %s191, %s194
    %p200 = scmp.eq.s32.totalorder %s13, 0
    %p201 = por %p199, %p200
    %p202 = scmp.ne.s32.totalorder %s191, %s194
    %p203 = scmp.eq.s32.totalorder %s18, 1
    %p204 = por %p202, %p203
    %p205 = scmp.ne.s32.totalorder %s194, %s195
    %p206 = scmp.eq.s32.totalorder %s18, 0
    %p207 = por %p205, %p206
    %p208 = scmp.ne.s32.totalorder %s194, %s195
    %p209 = scmp.eq.s32.totalorder %s19, 1
    %p210 = por %p208, %p209
    %p212 = scmp.ne.s32.totalorder %s195, %s211
    %p213 = scmp.eq.s32.totalorder %s19, 0
    %p214 = por %p212, %p213
    %p215 = scmp.le.s32.totalorder 1, %s13
    %p216 = scmp.lt.s32.totalorder %s13, 3
    %p217 = pnand %p215, %p216
    %p218 = pneg %p217
    // Predicated region
    $region9: #{cross_transformer_forward.7} parent=5 // pred_check
      _
    $region10: #{cross_transformer_forward.7} parent=5 // pred_check_branch
      %220 = sbr.rel (%p217) target = $region12
    $region11: #{cross_transformer_forward.7} parent=5 // pred_region
      %s221 = ssub.s32 %s13, 1
      // Predicated region
      $region13: #{cross_transformer_forward.7} parent=11 // pred_check
        %p222 = pneg %p74
      $region14: #{cross_transformer_forward.7} parent=11 // pred_check_branch
        %224 = sbr.rel (%p222) target = $region16
      $region15: #{cross_transformer_forward.7} parent=11 // pred_region
        _
      $region16: #{cross_transformer_forward.7} parent=11 // pred_fallthru
        _
      // Predicated region
      $region17: #{cross_transformer_forward.7} parent=11 // pred_check
        %p225 = pneg %p95
      $region18: #{cross_transformer_forward.7} parent=11 // pred_check_branch
        %227 = sbr.rel (%p225) target = $region20
      $region19: #{cross_transformer_forward.7} parent=11 // pred_region
        _
      $region20: #{cross_transformer_forward.7} parent=11 // pred_fallthru
        _
      // Predicated region
      $region21: #{cross_transformer_forward.7} parent=11 // pred_check
        %p228 = pneg %p116
      $region22: #{cross_transformer_forward.7} parent=11 // pred_check_branch
        %230 = sbr.rel (%p228) target = $region24
      $region23: #{cross_transformer_forward.7} parent=11 // pred_region
        _
      $region24: #{cross_transformer_forward.7} parent=11 // pred_fallthru
        _
      // Predicated region
      $region25: #{cross_transformer_forward.7} parent=11 // pred_check
        %p231 = pneg %p137
      $region26: #{cross_transformer_forward.7} parent=11 // pred_check_branch
        %233 = sbr.rel (%p231) target = $region28
      $region27: #{cross_transformer_forward.7} parent=11 // pred_region
        _
      $region28: #{cross_transformer_forward.7} parent=11 // pred_fallthru
        _
      // Predicated region
      $region29: #{cross_transformer_forward.7} parent=11 // pred_check
        %p234 = pneg %p158
      $region30: #{cross_transformer_forward.7} parent=11 // pred_check_branch
        %236 = sbr.rel (%p234) target = $region32
      $region31: #{cross_transformer_forward.7} parent=11 // pred_region
        _
      $region32: #{cross_transformer_forward.7} parent=11 // pred_fallthru
        _
      // Predicated region
      $region33: #{cross_transformer_forward.7} parent=11 // pred_check
        %p237 = pneg %p179
      $region34: #{cross_transformer_forward.7} parent=11 // pred_check_branch
        %239 = sbr.rel (%p237) target = $region36
      $region35: #{cross_transformer_forward.7} parent=11 // pred_region
        _
      $region36: #{cross_transformer_forward.7} parent=11 // pred_fallthru
        _
    $region12: #{cross_transformer_forward.7} parent=5 // pred_fallthru
      _
    %p240 = scmp.lt.s32.totalorder %s13, 2
    // Predicated region
    $region37: #{cross_transformer_forward.7} parent=5 // pred_check
      %p241 = pneg %p240
    $region38: #{cross_transformer_forward.7} parent=5 // pred_check_branch
      %243 = sbr.rel (%p241) target = $region40
    $region39: #{cross_transformer_forward.7} parent=5 // pred_region
      // Predicated region
      $region41: #{cross_transformer_forward.7} parent=39 // pred_check
        %p244 = pneg %p47
      $region42: #{cross_transformer_forward.7} parent=39 // pred_check_branch
        %246 = sbr.rel (%p244) target = $region44
      $region43: #{cross_transformer_forward.7} parent=39 // pred_region
        %s247 = smul.u32 2, %s21
        %p248 = scmp.lt.s32.totalorder %s20, 1
        %s249 = scalar_select %p248, %s20, 1
        %p250 = scmp.lt.s32.totalorder %s247, 1
        %s251 = scalar_select %p250, %s247, 1
        %s252 = smul.addr %s249, 2
        %s253 = sadd.s32 %s251, %s252
        %s254 = smul.addr %s253, 8
        %s255 = scalar_lea.vmem %s0, %s254
        %s256 = smul.u32 2, %s21
      $region44: #{cross_transformer_forward.7} parent=39 // pred_fallthru
        _
    $region40: #{cross_transformer_forward.7} parent=5 // pred_fallthru
      _
    %p257 = scmp.le.s32.totalorder 1, %s13
    %p258 = scmp.lt.s32.totalorder %s13, 3
    %p259 = pnand %p257, %p258
    %p260 = pneg %p259
    // Predicated region
    $region45: #{cross_transformer_forward.7} parent=5 // pred_check
      _
    $region46: #{cross_transformer_forward.7} parent=5 // pred_check_branch
      %262 = sbr.rel (%p259) target = $region48
    $region47: #{cross_transformer_forward.7} parent=5 // pred_region
      %s263 = ssub.s32 %s13, 1
      %s264 = smul.u32 2, %s23
      %p265 = scmp.lt.s32.totalorder %s22, 1
      %s266 = scalar_select %p265, %s22, 1
      %p267 = scmp.lt.s32.totalorder %s264, 1
      %s268 = scalar_select %p267, %s264, 1
      %s269 = smul.addr %s266, 2
      %s270 = sadd.s32 %s268, %s269
      %s271 = smul.addr %s270, 8
      %s272 = scalar_lea.vmem %s0, %s271
      %p273 = pneg %p53
      %p274 = pneg %p50
      %p275 = pneg %p74
      %p276 = pneg %p71
      %p277 = pneg %p95
      %p278 = pneg %p92
      %p279 = pneg %p116
      %p280 = pneg %p113
      %p281 = pneg %p137
      %p282 = pneg %p134
      %p283 = pneg %p158
      %p284 = pneg %p155
      %p285 = pneg %p179
      %p286 = pneg %p176
      %p287 = pneg %p207
      %p288 = pneg %p204
      %s289 = smul.u32 2, %s23
      %p290 = scmp.lt.s32.totalorder %s22, 1
      %s291 = scalar_select %p290, %s22, 1
      %p292 = scmp.lt.s32.totalorder %s289, 1
      %s293 = scalar_select %p292, %s289, 1
      %s294 = smul.addr %s291, 2
      %s295 = sadd.s32 %s293, %s294
      %s296 = smul.addr %s295, 8
      %s297 = scalar_lea.vmem %s7, %s296
      %s298 = smul.u32 2, %s23
      %p299 = scmp.lt.s32.totalorder %s22, 1
      %s300 = scalar_select %p299, %s22, 1
      %p301 = scmp.lt.s32.totalorder %s298, 1
      %s302 = scalar_select %p301, %s298, 1
      %s303 = smul.addr %s300, 2
      %s304 = sadd.s32 %s302, %s303
      %s305 = smul.addr %s304, 8
      %s306 = scalar_lea.vmem %s0, %s305
      %s307 = smul.u32 2, %s23
      %s308 = smul.u32 2, %s23
      %p309 = scmp.lt.s32.totalorder %s22, 1
      %s310 = scalar_select %p309, %s22, 1
      %p311 = scmp.lt.s32.totalorder %s308, 1
      %s312 = scalar_select %p311, %s308, 1
      %s313 = smul.addr %s310, 2
      %s314 = sadd.s32 %s312, %s313
      %s315 = smul.addr %s314, 8
      %s316 = scalar_lea.vmem %s7, %s315
      %s317 = smul.u32 2, %s23
      %v318 = vld [vmem:[%s306] sm:$0xff]
      %v319 = vld [vmem:[%s306 + $0x8] sm:$0xff]
      %v320 = vld [vmem:[%s1] sm:$0xff]
      %v321 = vld [vmem:[%s1 + $0x8] sm:$0xff]
      %v322 = vld [vmem:[%s1 + $0x10] sm:$0xff]
      %v323 = vld [vmem:[%s1 + $0x18] sm:$0xff]
      %v324 = vld [vmem:[%s2] sm:$0x1]
      %v326 = vlaneseq
      %v327 = vshrl.u32 %v326, 7
      %v328 = vsub.s32 0, %v327
      %v329 = vrot.slane %v324, %v328
      %vm331 = vcmask 261120
      %v333 = vsel %vm331, %v318, 0
      %v336 = vsel %vm331, %v319, 0
      %338 = vmatprep.subr.mxu0 0.0
      %339 = vmatpush1.msra.mxu0 %v320
      %340 = vmatprep.subr.mxu0 0.0
      %341 = vmatpush1.msra.mxu0 %v321
      %342 = vmatprep.subr.mxu0 0.0
      %343 = vmatpush1.msra.mxu0 %v322
      %344 = vmatprep.subr.mxu0 0.0
      %345 = vmatpush1.msra.mxu0 %v323
      %346 = vmatprep.subr.mxu0 0.0
      %347 = vmatpush1.msra.mxu0 0.0
      %348 = vmatprep.subr.mxu0 0.0
      %349 = vmatpush1.msra.mxu0 0.0
      %350 = vmatprep.subr.mxu0 0.0
      %351 = vmatpush1.msra.mxu0 0.0
      %352 = vmatprep.subr.mxu0 0.0
      %353 = vmatpush1.msra.mxu0 0.0
      %354 = vmatprep.subr.mxu0 0.0
      %355 = vmatpush1.msra.mxu0 0.0
      %356 = vmatprep.subr.mxu0 0.0
      %357 = vmatpush1.msra.mxu0 0.0
      %358 = vmatprep.subr.mxu0 0.0
      %359 = vmatpush1.msra.mxu0 0.0
      %360 = vmatprep.subr.mxu0 0.0
      %361 = vmatpush1.msra.mxu0 0.0
      %362 = vmatprep.subr.mxu0 0.0
      %363 = vmatpush1.msra.mxu0 0.0
      %364 = vmatprep.subr.mxu0 0.0
      %365 = vmatpush1.msra.mxu0 0.0
      %366 = vmatprep.subr.mxu0 0.0
      %367 = vmatpush1.msra.mxu0 0.0
      %368 = vmatprep.subr.mxu0 0.0
      %369 = vmatpush1.msra.mxu0 0.0
      %370 = vmatprep.subr.mxu0 0.0
      %371 = vmatpush1.msra.mxu0 0.0
      %372 = vmatprep.subr.mxu0 0.0
      %373 = vmatpush1.msra.mxu0 0.0
      %374 = vmatprep.subr.mxu0 0.0
      %375 = vmatpush1.msra.mxu0 0.0
      %376 = vmatprep.subr.mxu0 0.0
      %377 = vmatpush1.msra.mxu0 0.0
      %378 = vmatprep.subr.mxu0 0.0
      %379 = vmatpush1.msra.mxu0 0.0
      %380 = vmatprep.subr.mxu0 0.0
      %381 = vmatpush1.msra.mxu0 0.0
      %382 = vmatprep.subr.mxu0 0.0
      %383 = vmatpush1.msra.mxu0 0.0
      %384 = vmatprep.subr.mxu0 0.0
      %385 = vmatpush1.msra.mxu0 0.0
      %386 = vmatprep.subr.mxu0 0.0
      %387 = vmatpush1.msra.mxu0 0.0
      %388 = vmatprep.subr.mxu0 0.0
      %389 = vmatpush1.msra.mxu0 0.0
      %390 = vmatprep.subr.mxu0 0.0
      %391 = vmatpush1.msra.mxu0 0.0
      %392 = vmatprep.subr.mxu0 0.0
      %393 = vmatpush1.msra.mxu0 0.0
      %394 = vmatprep.subr.mxu0 0.0
      %395 = vmatpush1.msra.mxu0 0.0
      %396 = vmatprep.subr.mxu0 0.0
      %397 = vmatpush1.msra.mxu0 0.0
      %398 = vmatprep.subr.mxu0 0.0
      %399 = vmatpush1.msra.mxu0 0.0
      %400 = vmatprep.subr.mxu0 0.0
      %401 = vmatpush1.msra.mxu0 0.0
      %402 = vmatprep.mubr.f32.mxu0 0.0
      %403 = vmatmul.mubr.f32.gmra.mrb[0].mxu0 %v333
      %v404 = vpop.f32.mrb[0].mxu0
      %v405 = vadd.f32 %v329, %v404
      %v406 = vpop.f32.mrb[0].mxu0
      %407 = vmatprep.mubr.f32.mxu0 0.0
      %408 = vmatmul.mubr.f32.gmra.mrb[0].mxu0 %v336
      %v409 = vpop.f32.mrb[0].mxu0
      %v410 = vadd.f32 %v329, %v409
      %v411 = vpop.f32.mrb[0].mxu0
      %412 = vdwg.mxu0
      %v413 = vmax.f32 %v405, 0.0
      %v414 = vmax.f32 %v410, 0.0
      %v415 = vld [vmem:[%s3] sm:$0xff]
      %v416 = vld [vmem:[%s3 + $0x8] sm:$0xff]
      %v417 = vld [vmem:[%s3 + $0x10] sm:$0xff]
      %v418 = vld [vmem:[%s3 + $0x18] sm:$0xff]
      %v419 = vld [vmem:[%s3 + $0x20] sm:$0xff]
      %v420 = vld [vmem:[%s3 + $0x28] sm:$0xff]
      %v421 = vld [vmem:[%s3 + $0x30] sm:$0xff]
      %v422 = vld [vmem:[%s3 + $0x38] sm:$0xff]
      %v423 = vld [vmem:[%s3 + $0x40] sm:$0xff]
      %v424 = vld [vmem:[%s3 + $0x48] sm:$0xff]
      %v425 = vld [vmem:[%s3 + $0x50] sm:$0xff]
      %v426 = vld [vmem:[%s3 + $0x58] sm:$0xff]
      %v427 = vld [vmem:[%s3 + $0x60] sm:$0xff]
      %v428 = vld [vmem:[%s3 + $0x68] sm:$0xff]
      %v429 = vld [vmem:[%s3 + $0x70] sm:$0xff]
      %v430 = vld [vmem:[%s3 + $0x78] sm:$0xff]
      %v431 = vld [vmem:[%s4] sm:$0x1]
      %v433 = vlaneseq
      %v434 = vshrl.u32 %v433, 7
      %v435 = vsub.s32 0, %v434
      %v436 = vrot.slane %v431, %v435
      %438 = vmatprep.subr.mxu0 0.0
      %439 = vmatpush1.msra.mxu0 %v415
      %440 = vmatprep.subr.mxu0 0.0
      %441 = vmatpush1.msra.mxu0 %v416
      %442 = vmatprep.subr.mxu0 0.0
      %443 = vmatpush1.msra.mxu0 %v417
      %444 = vmatprep.subr.mxu0 0.0
      %445 = vmatpush1.msra.mxu0 %v418
      %446 = vmatprep.subr.mxu0 0.0
      %447 = vmatpush1.msra.mxu0 %v419
      %448 = vmatprep.subr.mxu0 0.0
      %449 = vmatpush1.msra.mxu0 %v420
      %450 = vmatprep.subr.mxu0 0.0
      %451 = vmatpush1.msra.mxu0 %v421
      %452 = vmatprep.subr.mxu0 0.0
      %453 = vmatpush1.msra.mxu0 %v422
      %454 = vmatprep.subr.mxu0 0.0
      %455 = vmatpush1.msra.mxu0 %v423
      %456 = vmatprep.subr.mxu0 0.0
      %457 = vmatpush1.msra.mxu0 %v424
      %458 = vmatprep.subr.mxu0 0.0
      %459 = vmatpush1.msra.mxu0 %v425
      %460 = vmatprep.subr.mxu0 0.0
      %461 = vmatpush1.msra.mxu0 %v426
      %462 = vmatprep.subr.mxu0 0.0
      %463 = vmatpush1.msra.mxu0 %v427
      %464 = vmatprep.subr.mxu0 0.0
      %465 = vmatpush1.msra.mxu0 %v428
      %466 = vmatprep.subr.mxu0 0.0
      %467 = vmatpush1.msra.mxu0 %v429
      %468 = vmatprep.subr.mxu0 0.0
      %469 = vmatpush1.msra.mxu0 %v430
      %470 = vmatprep.subr.mxu0 0.0
      %471 = vmatpush1.msra.mxu0 0.0
      %472 = vmatprep.subr.mxu0 0.0
      %473 = vmatpush1.msra.mxu0 0.0
      %474 = vmatprep.subr.mxu0 0.0
      %475 = vmatpush1.msra.mxu0 0.0
      %476 = vmatprep.subr.mxu0 0.0
      %477 = vmatpush1.msra.mxu0 0.0
      %478 = vmatprep.subr.mxu0 0.0
      %479 = vmatpush1.msra.mxu0 0.0
      %480 = vmatprep.subr.mxu0 0.0
      %481 = vmatpush1.msra.mxu0 0.0
      %482 = vmatprep.subr.mxu0 0.0
      %483 = vmatpush1.msra.mxu0 0.0
      %484 = vmatprep.subr.mxu0 0.0
      %485 = vmatpush1.msra.mxu0 0.0
      %486 = vmatprep.subr.mxu0 0.0
      %487 = vmatpush1.msra.mxu0 0.0
      %488 = vmatprep.subr.mxu0 0.0
      %489 = vmatpush1.msra.mxu0 0.0
      %490 = vmatprep.subr.mxu0 0.0
      %491 = vmatpush1.msra.mxu0 0.0
      %492 = vmatprep.subr.mxu0 0.0
      %493 = vmatpush1.msra.mxu0 0.0
      %494 = vmatprep.subr.mxu0 0.0
      %495 = vmatpush1.msra.mxu0 0.0
      %496 = vmatprep.subr.mxu0 0.0
      %497 = vmatpush1.msra.mxu0 0.0
      %498 = vmatprep.subr.mxu0 0.0
      %499 = vmatpush1.msra.mxu0 0.0
      %500 = vmatprep.subr.mxu0 0.0
      %501 = vmatpush1.msra.mxu0 0.0
      %502 = vmatprep.mubr.f32.mxu0 0.0
      %503 = vmatmul.mubr.f32.gmra.mrb[0].mxu0 %v413
      %v504 = vpop.f32.mrb[0].mxu0
      %v505 = vadd.f32 %v436, %v504
      %v506 = vpop.f32.mrb[0].mxu0
      %507 = vmatprep.mubr.f32.mxu0 0.0
      %508 = vmatmul.mubr.f32.gmra.mrb[0].mxu0 %v414
      %v509 = vpop.f32.mrb[0].mxu0
      %v510 = vadd.f32 %v436, %v509
      %v511 = vpop.f32.mrb[0].mxu0
      %512 = vdwg.mxu0
      %v513 = vadd.f32 %v318, %v505
      %v514 = vadd.f32 %v319, %v510
      %v515 = vsel %vm331, %v513, 0.0
      %516 = vadd.xlane.f32.xlu0 %v515
      %v517 = vpop.xlane.xlu0 %516
      %v518 = vsel %vm331, %v514, 0.0
      %519 = vadd.xlane.f32.xlu0 %v518
      %v520 = vpop.xlane.xlu0 %519
      %v521 = vrcp.pop 32.0
      %v522 = vmul.f32 %v517, %v521
      %v523 = vmul.f32 %v520, %v521
      %v524 = vsub.f32 %v513, %v522
      %v525 = vsub.f32 %v514, %v523
      %v526 = vmul.f32 %v524, %v524
      %v527 = vmul.f32 %v525, %v525
      %v528 = vsel %vm331, %v526, 0.0
      %529 = vadd.xlane.f32.xlu0 %v528
      %v530 = vpop.xlane.xlu0 %529
      %v531 = vsel %vm331, %v527, 0.0
      %532 = vadd.xlane.f32.xlu0 %v531
      %v533 = vpop.xlane.xlu0 %532
      %v534 = vmul.f32 %v530, %v521
      %v535 = vmul.f32 %v533, %v521
      %v536 = vadd.f32 %v534, 1e-05
      %v537 = vadd.f32 %v535, 1e-05
      %v538 = vrsqrt.pop %v536
      %v539 = vrsqrt.pop %v537
      %v540 = vmul.f32 %v524, %v538
      %v541 = vmul.f32 %v525, %v539
      %v542 = vld [vmem:[%s5] sm:$0x1]
      %v544 = vlaneseq
      %v545 = vshrl.u32 %v544, 7
      %v546 = vsub.s32 0, %v545
      %v547 = vrot.slane %v542, %v546
      %v549 = vmul.f32 %v540, %v547
      %v550 = vmul.f32 %v541, %v547
      %v551 = vld [vmem:[%s6] sm:$0x1]
      %v553 = vlaneseq
      %v554 = vshrl.u32 %v553, 7
      %v555 = vsub.s32 0, %v554
      %v556 = vrot.slane %v551, %v555
      %v558 = vadd.f32 %v549, %v556
      %v559 = vadd.f32 %v550, %v556
      %560 = vst.msk [vmem:[%s316] sm:$0xff] %vm331, %v558
      %561 = vst.msk [vmem:[%s316 + $0x8] sm:$0xff] %vm331, %v559
      %s562 = smul.u32 2, %s23
      %p563 = scmp.lt.s32.totalorder %s22, 1
      %s564 = scalar_select %p563, %s22, 1
      %p565 = scmp.lt.s32.totalorder %s562, 1
      %s566 = scalar_select %p565, %s562, 1
      %s567 = smul.addr %s564, 2
      %s568 = sadd.s32 %s566, %s567
      %s569 = smul.addr %s568, 8
      %s570 = scalar_lea.vmem %s7, %s569
      // Predicated region
      $region49: #{cross_transformer_forward.7} parent=47 // pred_check
        %p571 = pneg %p204
      $region50: #{cross_transformer_forward.7} parent=47 // pred_check_branch
        %573 = sbr.rel (%p571) target = $region52
      $region51: #{cross_transformer_forward.7} parent=47 // pred_region
        %s574 = smul.u32 2, %s23
      $region52: #{cross_transformer_forward.7} parent=47 // pred_fallthru
        _
    $region48: #{cross_transformer_forward.7} parent=5 // pred_fallthru
      _
    %p575 = scmp.le.s32.totalorder 2, %s13
    // Predicated region
    $region53: #{cross_transformer_forward.7} parent=5 // pred_check
      %p576 = pneg %p575
    $region54: #{cross_transformer_forward.7} parent=5 // pred_check_branch
      %578 = sbr.rel (%p576) target = $region56
    $region55: #{cross_transformer_forward.7} parent=5 // pred_region
      %s579 = ssub.s32 %s13, 2
      // Predicated region
      $region57: #{cross_transformer_forward.7} parent=55 // pred_check
        %p580 = pneg %p210
      $region58: #{cross_transformer_forward.7} parent=55 // pred_check_branch
        %582 = sbr.rel (%p580) target = $region60
      $region59: #{cross_transformer_forward.7} parent=55 // pred_region
        %s583 = smul.u32 2, %s25
        %p584 = scmp.lt.s32.totalorder %s24, 1
        %s585 = scalar_select %p584, %s24, 1
        %p586 = scmp.lt.s32.totalorder %s583, 1
        %s587 = scalar_select %p586, %s583, 1
        %s588 = smul.addr %s585, 2
        %s589 = sadd.s32 %s587, %s588
        %s590 = smul.addr %s589, 8
        %s591 = scalar_lea.vmem %s7, %s590
      $region60: #{cross_transformer_forward.7} parent=55 // pred_fallthru
        _
    $region56: #{cross_transformer_forward.7} parent=5 // pred_fallthru
      _
  $region6: #{cross_transformer_forward.7} parent=0 // loop_footer
    %s17 = sadd.s32 1, %s13
  $region7: #{cross_transformer_forward.7} parent=0 // loop_footer_branch
    %12 = sbr.rel target = $region3
  $region8: #{cross_transformer_forward.7} parent=0 // loop_exit
    _

</llo_original>
